<compile_context>
chip_gen: v7x
topology: tpu7x:2x2x1
jax: 0.10.0
libtpu: 0.0.40
codegen_flags: <defaults>
</compile_context>

<pallas_src>
from functools import partial

import jax
import jax.numpy as jnp
from jax.experimental import pallas as pl
from jax.experimental.pallas import tpu as pltpu

KERNEL_SIZES = (3, 4, 5)
E_PAD = 128     # contraction (embedding) dim padded to a full lane width
F_PAD = 128     # conv feature maps padded to a full lane width
C_PAD = 128     # class logits padded to a full lane width


def topic_cnn_kernel(x_ref, w3_ref, w4_ref, w5_ref, b3_ref, b4_ref, b5_ref,
                     wfc1_ref, bfc1_ref, wfc2_ref, bfc2_ref, out_ref,
                     *, Lp, L_orig, kernel_sizes):
    R, _ = x_ref.shape                      # R = TB * Lp rows, lane-dense
    TB = R // Lp
    Fp = b3_ref.shape[-1]

    x = x_ref[...]                          # (TB*Lp, 128) f32

    # Time-shifted copies via XLU sublane rotation (shift R-i ≡ -i mod R, so
    # shifted[i][r] == x[r + i]).  Rolls are in f32, cast to bf16 afterwards.
    kmax = max(kernel_sizes)
    shifted = [x.astype(jnp.bfloat16)]
    for i in range(1, kmax):
        shifted.append(pltpu.roll(x, shift=R - i, axis=0).astype(jnp.bfloat16))

    w_refs = {3: w3_ref, 4: w4_ref, 5: w5_ref}
    b_refs = {3: b3_ref, 4: b4_ref, 5: b5_ref}

    feats = []
    for k in kernel_sizes:
        # im2col window: lane-aligned concat of the k time-shifted copies.
        win = jnp.concatenate(shifted[:k], axis=-1)             # (TB*Lp, k*128) bf16
        z = jax.lax.dot_general(win, w_refs[k][...],
                                (((1,), (0,)), ((), ())),
                                preferred_element_type=jnp.float32)  # (TB*Lp, Fp)
        y = z.reshape(TB, Lp, Fp) + b_refs[k][...][None, :, :]  # folded-BN bias
        y = jnp.maximum(y, 0.0)                                  # ReLU (f32, VPU)
        # Zero conv positions whose window spans time padding or wraps into the
        # next batch row.  ReLU output is >= 0, so the time max is unchanged and
        # matches the original max-pool over L_orig - k + 1 positions.
        t_idx = jax.lax.broadcasted_iota(jnp.int32, (Lp, Fp), 0)
        valid = (t_idx < (L_orig - k + 1)).astype(jnp.float32)   # (Lp, Fp)
        y = y * valid[None, :, :]
        feats.append(jnp.max(y, axis=1))                         # (TB, Fp)

    feat = jnp.concatenate(feats, axis=-1)                       # (TB, 3*Fp)

    # TODO(synk): dropout_1 / dropout_2 are identity in eval mode; not implemented.
    h = jax.lax.dot_general(feat.astype(wfc1_ref.dtype), wfc1_ref[...],
                            (((1,), (0,)), ((), ())),
                            preferred_element_type=jnp.float32) + bfc1_ref[...]
    h = jnp.maximum(h, 0.0)                                      # fc1 + folded BN1d + ReLU
    logits = jax.lax.dot_general(h.astype(wfc2_ref.dtype), wfc2_ref[...],
                                 (((1,), (0,)), ((), ())),
                                 preferred_element_type=jnp.float32) + bfc2_ref[...]
    out_ref[...] = logits.astype(out_ref.dtype)


@partial(jax.jit, static_argnames=("num_classes", "tb"))
def topic_cnn_forward(token_ids, masks, kp, *, num_classes, tb=None):
    # TODO(synk): the embedding gather + mask multiply could be fused into the
    # kernel (scalar-prefetched token ids + DMA row gather from an HBM-resident
    # table) to avoid the extra HBM round trip of x; matters most on v5e.
    emb = jnp.take(kp["embedding"], token_ids, axis=0)           # (B, L, E) f32
    x = emb * masks[:, :, None].astype(emb.dtype)
    B, L, E = x.shape
    Cp = kp["wfc2"].shape[1]

    Lp = ((L + 7) // 8) * 8                  # time axis padded to sublane multiple
    if tb is None:
        b8 = ((B + 7) // 8) * 8
        tb = min(256, b8)
        if b8 // tb < 2 and tb >= 16:        # >= 2 grid steps so "parallel" can
            tb = ((tb // 2 + 7) // 8) * 8    # shard across both v7x TensorCores
    assert tb % 8 == 0
    B_pad = ((B + tb - 1) // tb) * tb

    # Zero-pad batch, time and embedding dims; present x as a lane-dense 2D slab.
    x = jnp.pad(x, ((0, B_pad - B), (0, Lp - L), (0, E_PAD - E)))
    x2d = x.reshape(B_pad * Lp, E_PAD)

    kernel = partial(topic_cnn_kernel, Lp=Lp, L_orig=L, kernel_sizes=KERNEL_SIZES)
    resident = lambda arr: pl.BlockSpec(arr.shape, lambda i: (0, 0))   # weights stay in VMEM

    out = pl.pallas_call(
        kernel,
        out_shape=jax.ShapeDtypeStruct((B_pad, Cp), jnp.float32),
        grid_spec=pltpu.PrefetchScalarGridSpec(
            num_scalar_prefetch=0,
            grid=(B_pad // tb,),
            in_specs=[
                pl.BlockSpec((tb * Lp, E_PAD), lambda i: (i, 0)),
                resident(kp["w3"]), resident(kp["w4"]), resident(kp["w5"]),
                resident(kp["b3"]), resident(kp["b4"]), resident(kp["b5"]),
                resident(kp["wfc1"]), resident(kp["bfc1"]),
                resident(kp["wfc2"]), resident(kp["bfc2"]),
            ],
            out_specs=pl.BlockSpec((tb, Cp), lambda i: (i, 0)),
        ),
        compiler_params=pltpu.CompilerParams(
            dimension_semantics=("parallel",),
            vmem_limit_bytes=32 * 1024 * 1024,   # per-step footprint is only a few MiB
        ),
    )(x2d, kp["w3"], kp["w4"], kp["w5"], kp["b3"], kp["b4"], kp["b5"],
      kp["wfc1"], kp["bfc1"], kp["wfc2"], kp["bfc2"])
    return out[:B, :num_classes]


def make_params(key, vocab_size, emb_size, num_feat_maps, num_classes, kernel_sizes):
    """Deterministic synthetic parameters.

    Returns (kernel_params, ref_params): kernel_params hold BN-folded, padded,
    bf16-cast tensors laid out for the Pallas kernel; ref_params hold the
    unpadded folded tensors for the plain-JAX reference.
    """
    eps = 1e-5
    keys = iter(jax.random.split(key, 32))
    kp, rp = {}, {}

    emb = 0.1 * jax.random.normal(next(keys), (vocab_size, emb_size), jnp.float32)
    kp["embedding"] = emb
    rp["embedding"] = emb

    for k in kernel_sizes:
        # torch Conv2d weight shape: (F, 1, k, E); bias: (F,). BatchNorm2d folded.
        w = 0.1 * jax.random.normal(next(keys), (num_feat_maps, 1, k, emb_size), jnp.float32)
        b = 0.1 * jax.random.normal(next(keys), (num_feat_maps,), jnp.float32)
        gamma = 1.0 + 0.1 * jax.random.normal(next(keys), (num_feat_maps,), jnp.float32)
        beta = 0.1 * jax.random.normal(next(keys), (num_feat_maps,), jnp.float32)
        mean = 0.1 * jax.random.normal(next(keys), (num_feat_maps,), jnp.float32)
        var = 0.5 + jnp.abs(jax.random.normal(next(keys), (num_feat_maps,), jnp.float32))
        scale = gamma / jnp.sqrt(var + eps)
        w_mat = w.reshape(num_feat_maps, k * emb_size).T * scale[None, :]      # (k*E, F)
        b_fold = (b - mean) * scale + beta                                     # (F,)
        rp[f"w{k}"] = w_mat
        rp[f"b{k}"] = b_fold
        # Per-tap (E, F) block -> zero-padded (E_PAD, F_PAD); stack taps along rows.
        blocks = []
        for i in range(k):
            blk = jnp.zeros((E_PAD, F_PAD), jnp.float32)
            blk = blk.at[:emb_size, :num_feat_maps].set(w_mat[i * emb_size:(i + 1) * emb_size, :])
            blocks.append(blk)
        kp[f"w{k}"] = jnp.concatenate(blocks, axis=0).astype(jnp.bfloat16)     # (k*E_PAD, F_PAD)
        kp[f"b{k}"] = jnp.zeros((1, F_PAD), jnp.float32).at[0, :num_feat_maps].set(b_fold)

    # fc1 (+ folded BatchNorm1d)
    in_f = num_feat_maps * len(kernel_sizes)
    w1 = 0.1 * jax.random.normal(next(keys), (128, in_f), jnp.float32)         # torch fc1.weight
    b1 = 0.1 * jax.random.normal(next(keys), (128,), jnp.float32)
    g1 = 1.0 + 0.1 * jax.random.normal(next(keys), (128,), jnp.float32)
    be1 = 0.1 * jax.random.normal(next(keys), (128,), jnp.float32)
    m1 = 0.1 * jax.random.normal(next(keys), (128,), jnp.float32)
    v1 = 0.5 + jnp.abs(jax.random.normal(next(keys), (128,), jnp.float32))
    s1 = g1 / jnp.sqrt(v1 + eps)
    wfc1 = w1.T * s1[None, :]                                                  # (3F, 128)
    bfc1 = (b1 - m1) * s1 + be1
    rp["wfc1"] = wfc1
    rp["bfc1"] = bfc1
    # Re-lay rows into the padded feature layout; padded rows are 0 (no leak).
    wfc1_pad = jnp.zeros((len(kernel_sizes) * F_PAD, 128), jnp.float32)
    for j in range(len(kernel_sizes)):
        wfc1_pad = wfc1_pad.at[j * F_PAD:j * F_PAD + num_feat_maps, :].set(
            wfc1[j * num_feat_maps:(j + 1) * num_feat_maps, :])
    kp["wfc1"] = wfc1_pad.astype(jnp.bfloat16)
    kp["bfc1"] = bfc1[None, :]

    # fc2, class dim padded C -> C_PAD with zero weights/bias (sliced off outside).
    w2 = 0.1 * jax.random.normal(next(keys), (num_classes, 128), jnp.float32)
    b2 = 0.1 * jax.random.normal(next(keys), (num_classes,), jnp.float32)
    rp["wfc2"] = w2.T
    rp["bfc2"] = b2
    kp["wfc2"] = jnp.zeros((128, C_PAD), jnp.float32).at[:, :num_classes].set(w2.T).astype(jnp.bfloat16)
    kp["bfc2"] = jnp.zeros((1, C_PAD), jnp.float32).at[0, :num_classes].set(b2)
    return kp, rp


def reference_forward(token_ids, masks, rp, kernel_sizes=KERNEL_SIZES):
    """Plain-JAX mirror of the forward pass (bf16 matmul operands, f32 accum)."""
    emb = jnp.take(rp["embedding"], token_ids, axis=0) * masks[:, :, None]
    B, L, E = emb.shape
    emb_bf = emb.astype(jnp.bfloat16)
    feats = []
    for k in kernel_sizes:
        Lk = L - k + 1
        win = jnp.concatenate([emb_bf[:, i:i + Lk, :] for i in range(k)], axis=-1)
        y = jax.lax.dot_general(win.reshape(B * Lk, k * E), rp[f"w{k}"].astype(jnp.bfloat16),
                                (((1,), (0,)), ((), ())), preferred_element_type=jnp.float32)
        y = y.reshape(B, Lk, -1) + rp[f"b{k}"][None, None, :]
        feats.append(jnp.max(jnp.maximum(y, 0.0), axis=1))
    features = jnp.concatenate(feats, axis=-1)
    h = jax.lax.dot_general(features.astype(jnp.bfloat16), rp["wfc1"].astype(jnp.bfloat16),
                            (((1,), (0,)), ((), ())), preferred_element_type=jnp.float32)
    h = jnp.maximum(h + rp["bfc1"][None, :], 0.0)
    logits = jax.lax.dot_general(h.astype(jnp.bfloat16), rp["wfc2"].astype(jnp.bfloat16),
                                 (((1,), (0,)), ((), ())), preferred_element_type=jnp.float32)
    return logits + rp["bfc2"][None, :]


if __name__ == "__main__":
    key = jax.random.PRNGKey(0)
    k_tok, k_par = jax.random.split(key, 2)

    # Small shapes consistent with the module (vocab, emb, F=100, classes=16).
    B, L, E, V, F, C = 4, 16, 32, 50, 100, 16
    token_ids = jax.random.randint(k_tok, (B, L), 0, V)
    lengths = jnp.array([16, 12, 9, 14])
    masks = (jnp.arange(L)[None, :] < lengths[:, None]).astype(jnp.float32)

    kparams, rparams = make_params(k_par, V, E, F, C, KERNEL_SIZES)

    logits = topic_cnn_forward(token_ids, masks, kparams, num_classes=C)
    logits = jax.block_until_ready(logits)

    ref = reference_forward(token_ids, masks, rparams)
    assert logits.shape == (B, C)
    max_err = jnp.max(jnp.abs(logits - ref))
    assert jnp.allclose(logits, ref, atol=1e-2, rtol=1e-2), f"max abs err = {max_err}"
    print("KERNEL_OK")
</pallas_src>

<mosaic_0001>
module attributes {stable_mosaic.version = 11 : i64} {
  func.func @topic_cnn_kernel(%arg0: i32, %arg1: memref<128x128xf32, #tpu.memory_space<vmem>>, %arg2: memref<384x128xbf16, #tpu.memory_space<vmem>>, %arg3: memref<512x128xbf16, #tpu.memory_space<vmem>>, %arg4: memref<640x128xbf16, #tpu.memory_space<vmem>>, %arg5: memref<1x128xf32, #tpu.memory_space<vmem>>, %arg6: memref<1x128xf32, #tpu.memory_space<vmem>>, %arg7: memref<1x128xf32, #tpu.memory_space<vmem>>, %arg8: memref<384x128xbf16, #tpu.memory_space<vmem>>, %arg9: memref<1x128xf32, #tpu.memory_space<vmem>>, %arg10: memref<128x128xbf16, #tpu.memory_space<vmem>>, %arg11: memref<1x128xf32, #tpu.memory_space<vmem>>, %arg12: memref<8x128xf32, #tpu.memory_space<vmem>>) attributes {dimension_semantics = [#tpu.dimension_semantics<parallel>], iteration_bounds = array<i64: 1>, scalar_prefetch = 0 : i64, scratch_operands = 0 : i64, tpu.core_type = #tpu.core_type<tc>, window_params = [{transform_indices = @transform_0, window_bounds = array<i64: 128, 128>}, {pipeline_mode = #tpu.pipeline_mode<synchronous>, transform_indices = @transform_1, window_bounds = array<i64: 384, 128>}, {pipeline_mode = #tpu.pipeline_mode<synchronous>, transform_indices = @transform_2, window_bounds = array<i64: 512, 128>}, {pipeline_mode = #tpu.pipeline_mode<synchronous>, transform_indices = @transform_3, window_bounds = array<i64: 640, 128>}, {pipeline_mode = #tpu.pipeline_mode<synchronous>, transform_indices = @transform_4, window_bounds = array<i64: 1, 128>}, {pipeline_mode = #tpu.pipeline_mode<synchronous>, transform_indices = @transform_5, window_bounds = array<i64: 1, 128>}, {pipeline_mode = #tpu.pipeline_mode<synchronous>, transform_indices = @transform_6, window_bounds = array<i64: 1, 128>}, {pipeline_mode = #tpu.pipeline_mode<synchronous>, transform_indices = @transform_7, window_bounds = array<i64: 384, 128>}, {pipeline_mode = #tpu.pipeline_mode<synchronous>, transform_indices = @transform_8, window_bounds = array<i64: 1, 128>}, {pipeline_mode = #tpu.pipeline_mode<synchronous>, transform_indices = @transform_9, window_bounds = array<i64: 128, 128>}, {pipeline_mode = #tpu.pipeline_mode<synchronous>, transform_indices = @transform_10, window_bounds = array<i64: 1, 128>}, {transform_indices = @transform_11, window_bounds = array<i64: 8, 128>}]} {
    %c0 = arith.constant 0 : index
    %c0_0 = arith.constant 0 : index
    %0 = vector.load %arg1[%c0, %c0_0] : memref<128x128xf32, #tpu.memory_space<vmem>>, vector<128x128xf32>
    %1 = arith.truncf %0 : vector<128x128xf32> to vector<128x128xbf16>
    %c127_i32 = arith.constant 127 : i32
    %2 = tpu.dynamic_rotate %0 by %c127_i32 dim 0 : vector<128x128xf32>, i32 -> vector<128x128xf32>
    %3 = arith.truncf %2 : vector<128x128xf32> to vector<128x128xbf16>
    %c126_i32 = arith.constant 126 : i32
    %4 = tpu.dynamic_rotate %0 by %c126_i32 dim 0 : vector<128x128xf32>, i32 -> vector<128x128xf32>
    %5 = arith.truncf %4 : vector<128x128xf32> to vector<128x128xbf16>
    %c125_i32 = arith.constant 125 : i32
    %6 = tpu.dynamic_rotate %0 by %c125_i32 dim 0 : vector<128x128xf32>, i32 -> vector<128x128xf32>
    %7 = arith.truncf %6 : vector<128x128xf32> to vector<128x128xbf16>
    %c124_i32 = arith.constant 124 : i32
    %8 = tpu.dynamic_rotate %0 by %c124_i32 dim 0 : vector<128x128xf32>, i32 -> vector<128x128xf32>
    %9 = arith.truncf %8 : vector<128x128xf32> to vector<128x128xbf16>
    %10 = tpu.concatenate %1, %3, %5 in 1 : vector<128x128xbf16>, vector<128x128xbf16>, vector<128x128xbf16> -> vector<128x384xbf16>
    %c0_1 = arith.constant 0 : index
    %c0_2 = arith.constant 0 : index
    %11 = vector.load %arg2[%c0_1, %c0_2] : memref<384x128xbf16, #tpu.memory_space<vmem>>, vector<384x128xbf16>
    %cst = arith.constant dense<0.000000e+00> : vector<128x128xf32>
    %12 = tpu.matmul %10, %11, %cst {dimension_numbers = #tpu.dot_dimension_numbers<[1], [0], [0], [1], [0, 0, 1, 1], [], []>} : vector<128x384xbf16>, vector<384x128xbf16>, vector<128x128xf32> -> vector<128x128xf32>
    %13 = vector.shape_cast %12 : vector<128x128xf32> to vector<8x16x128xf32>
    %c0_3 = arith.constant 0 : index
    %c0_4 = arith.constant 0 : index
    %14 = vector.load %arg5[%c0_3, %c0_4] : memref<1x128xf32, #tpu.memory_space<vmem>>, vector<1x128xf32>
    %15 = vector.shape_cast %14 : vector<1x128xf32> to vector<1x1x128xf32>
    %16 = vector.broadcast %15 : vector<1x1x128xf32> to vector<8x16x128xf32>
    %17 = arith.addf %13, %16 : vector<8x16x128xf32>
    %cst_5 = arith.constant 0.000000e+00 : f32
    %18 = vector.broadcast %cst_5 : f32 to vector<8x16x128xf32>
    %19 = arith.maximumf %17, %18 : vector<8x16x128xf32>
    %20 = tpu.iota {dimensions = array<i32: 0>} : vector<16x128xi32>
    %c14_i32 = arith.constant 14 : i32
    %21 = vector.broadcast %c14_i32 : i32 to vector<16x128xi32>
    %22 = arith.cmpi slt, %20, %21 : vector<16x128xi32>
    %23 = arith.extui %22 : vector<16x128xi1> to vector<16x128xi32>
    %24 = arith.sitofp %23 : vector<16x128xi32> to vector<16x128xf32>
    %25 = vector.shape_cast %24 : vector<16x128xf32> to vector<1x16x128xf32>
    %26 = vector.broadcast %25 : vector<1x16x128xf32> to vector<8x16x128xf32>
    %27 = arith.mulf %19, %26 : vector<8x16x128xf32>
    %cst_6 = arith.constant dense<0xFF800000> : vector<8x128xf32>
    %28 = vector.multi_reduction <maximumf>, %27, %cst_6 [1] : vector<8x16x128xf32> to vector<8x128xf32>
    %29 = tpu.concatenate %1, %3, %5, %7 in 1 : vector<128x128xbf16>, vector<128x128xbf16>, vector<128x128xbf16>, vector<128x128xbf16> -> vector<128x512xbf16>
    %c0_7 = arith.constant 0 : index
    %c0_8 = arith.constant 0 : index
    %30 = vector.load %arg3[%c0_7, %c0_8] : memref<512x128xbf16, #tpu.memory_space<vmem>>, vector<512x128xbf16>
    %cst_9 = arith.constant dense<0.000000e+00> : vector<128x128xf32>
    %31 = tpu.matmul %29, %30, %cst_9 {dimension_numbers = #tpu.dot_dimension_numbers<[1], [0], [0], [1], [0, 0, 1, 1], [], []>} : vector<128x512xbf16>, vector<512x128xbf16>, vector<128x128xf32> -> vector<128x128xf32>
    %32 = vector.shape_cast %31 : vector<128x128xf32> to vector<8x16x128xf32>
    %c0_10 = arith.constant 0 : index
    %c0_11 = arith.constant 0 : index
    %33 = vector.load %arg6[%c0_10, %c0_11] : memref<1x128xf32, #tpu.memory_space<vmem>>, vector<1x128xf32>
    %34 = vector.shape_cast %33 : vector<1x128xf32> to vector<1x1x128xf32>
    %35 = vector.broadcast %34 : vector<1x1x128xf32> to vector<8x16x128xf32>
    %36 = arith.addf %32, %35 : vector<8x16x128xf32>
    %cst_12 = arith.constant 0.000000e+00 : f32
    %37 = vector.broadcast %cst_12 : f32 to vector<8x16x128xf32>
    %38 = arith.maximumf %36, %37 : vector<8x16x128xf32>
    %39 = tpu.iota {dimensions = array<i32: 0>} : vector<16x128xi32>
    %c13_i32 = arith.constant 13 : i32
    %40 = vector.broadcast %c13_i32 : i32 to vector<16x128xi32>
    %41 = arith.cmpi slt, %39, %40 : vector<16x128xi32>
    %42 = arith.extui %41 : vector<16x128xi1> to vector<16x128xi32>
    %43 = arith.sitofp %42 : vector<16x128xi32> to vector<16x128xf32>
    %44 = vector.shape_cast %43 : vector<16x128xf32> to vector<1x16x128xf32>
    %45 = vector.broadcast %44 : vector<1x16x128xf32> to vector<8x16x128xf32>
    %46 = arith.mulf %38, %45 : vector<8x16x128xf32>
    %cst_13 = arith.constant dense<0xFF800000> : vector<8x128xf32>
    %47 = vector.multi_reduction <maximumf>, %46, %cst_13 [1] : vector<8x16x128xf32> to vector<8x128xf32>
    %48 = tpu.concatenate %1, %3, %5, %7, %9 in 1 : vector<128x128xbf16>, vector<128x128xbf16>, vector<128x128xbf16>, vector<128x128xbf16>, vector<128x128xbf16> -> vector<128x640xbf16>
    %c0_14 = arith.constant 0 : index
    %c0_15 = arith.constant 0 : index
    %49 = vector.load %arg4[%c0_14, %c0_15] : memref<640x128xbf16, #tpu.memory_space<vmem>>, vector<640x128xbf16>
    %cst_16 = arith.constant dense<0.000000e+00> : vector<128x128xf32>
    %50 = tpu.matmul %48, %49, %cst_16 {dimension_numbers = #tpu.dot_dimension_numbers<[1], [0], [0], [1], [0, 0, 1, 1], [], []>} : vector<128x640xbf16>, vector<640x128xbf16>, vector<128x128xf32> -> vector<128x128xf32>
    %51 = vector.shape_cast %50 : vector<128x128xf32> to vector<8x16x128xf32>
    %c0_17 = arith.constant 0 : index
    %c0_18 = arith.constant 0 : index
    %52 = vector.load %arg7[%c0_17, %c0_18] : memref<1x128xf32, #tpu.memory_space<vmem>>, vector<1x128xf32>
    %53 = vector.shape_cast %52 : vector<1x128xf32> to vector<1x1x128xf32>
    %54 = vector.broadcast %53 : vector<1x1x128xf32> to vector<8x16x128xf32>
    %55 = arith.addf %51, %54 : vector<8x16x128xf32>
    %cst_19 = arith.constant 0.000000e+00 : f32
    %56 = vector.broadcast %cst_19 : f32 to vector<8x16x128xf32>
    %57 = arith.maximumf %55, %56 : vector<8x16x128xf32>
    %58 = tpu.iota {dimensions = array<i32: 0>} : vector<16x128xi32>
    %c12_i32 = arith.constant 12 : i32
    %59 = vector.broadcast %c12_i32 : i32 to vector<16x128xi32>
    %60 = arith.cmpi slt, %58, %59 : vector<16x128xi32>
    %61 = arith.extui %60 : vector<16x128xi1> to vector<16x128xi32>
    %62 = arith.sitofp %61 : vector<16x128xi32> to vector<16x128xf32>
    %63 = vector.shape_cast %62 : vector<16x128xf32> to vector<1x16x128xf32>
    %64 = vector.broadcast %63 : vector<1x16x128xf32> to vector<8x16x128xf32>
    %65 = arith.mulf %57, %64 : vector<8x16x128xf32>
    %cst_20 = arith.constant dense<0xFF800000> : vector<8x128xf32>
    %66 = vector.multi_reduction <maximumf>, %65, %cst_20 [1] : vector<8x16x128xf32> to vector<8x128xf32>
    %67 = tpu.concatenate %28, %47, %66 in 1 : vector<8x128xf32>, vector<8x128xf32>, vector<8x128xf32> -> vector<8x384xf32>
    %68 = arith.truncf %67 : vector<8x384xf32> to vector<8x384xbf16>
    %c0_21 = arith.constant 0 : index
    %c0_22 = arith.constant 0 : index
    %69 = vector.load %arg8[%c0_21, %c0_22] : memref<384x128xbf16, #tpu.memory_space<vmem>>, vector<384x128xbf16>
    %cst_23 = arith.constant dense<0.000000e+00> : vector<8x128xf32>
    %70 = tpu.matmul %68, %69, %cst_23 {dimension_numbers = #tpu.dot_dimension_numbers<[1], [0], [0], [1], [0, 0, 1, 1], [], []>} : vector<8x384xbf16>, vector<384x128xbf16>, vector<8x128xf32> -> vector<8x128xf32>
    %c0_24 = arith.constant 0 : index
    %c0_25 = arith.constant 0 : index
    %71 = vector.load %arg9[%c0_24, %c0_25] : memref<1x128xf32, #tpu.memory_space<vmem>>, vector<1x128xf32>
    %72 = vector.broadcast %71 : vector<1x128xf32> to vector<8x128xf32>
    %73 = arith.addf %70, %72 : vector<8x128xf32>
    %cst_26 = arith.constant 0.000000e+00 : f32
    %74 = vector.broadcast %cst_26 : f32 to vector<8x128xf32>
    %75 = arith.maximumf %73, %74 : vector<8x128xf32>
    %76 = arith.truncf %75 : vector<8x128xf32> to vector<8x128xbf16>
    %c0_27 = arith.constant 0 : index
    %c0_28 = arith.constant 0 : index
    %77 = vector.load %arg10[%c0_27, %c0_28] : memref<128x128xbf16, #tpu.memory_space<vmem>>, vector<128x128xbf16>
    %cst_29 = arith.constant dense<0.000000e+00> : vector<8x128xf32>
    %78 = tpu.matmul %76, %77, %cst_29 {dimension_numbers = #tpu.dot_dimension_numbers<[1], [0], [0], [1], [0, 0, 1, 1], [], []>} : vector<8x128xbf16>, vector<128x128xbf16>, vector<8x128xf32> -> vector<8x128xf32>
    %c0_30 = arith.constant 0 : index
    %c0_31 = arith.constant 0 : index
    %79 = vector.load %arg11[%c0_30, %c0_31] : memref<1x128xf32, #tpu.memory_space<vmem>>, vector<1x128xf32>
    %80 = vector.broadcast %79 : vector<1x128xf32> to vector<8x128xf32>
    %81 = arith.addf %78, %80 : vector<8x128xf32>
    %c0_32 = arith.constant 0 : index
    %c0_33 = arith.constant 0 : index
    %82 = vector.load %arg12[%c0_32, %c0_33] : memref<8x128xf32, #tpu.memory_space<vmem>>, vector<8x128xf32>
    tpu.vector_store %arg12[%c0_32, %c0_33], %81 {strides = array<i32>} : memref<8x128xf32, #tpu.memory_space<vmem>>, vector<8x128xf32>,
    return
  }
  func.func @transform_0(%arg0: i32) -> (i32, i32) {
    %c0_i32 = arith.constant 0 : i32
    %c0_i32_0 = arith.constant 0 : i32
    return %arg0, %c0_i32 : i32, i32
  }
  func.func @transform_1(%arg0: i32) -> (i32, i32) {
    %c0_i32 = arith.constant 0 : i32
    %c0_i32_0 = arith.constant 0 : i32
    %c0_i32_1 = arith.constant 0 : i32
    return %c0_i32, %c0_i32_0 : i32, i32
  }
  func.func @transform_2(%arg0: i32) -> (i32, i32) {
    %c0_i32 = arith.constant 0 : i32
    %c0_i32_0 = arith.constant 0 : i32
    %c0_i32_1 = arith.constant 0 : i32
    return %c0_i32, %c0_i32_0 : i32, i32
  }
  func.func @transform_3(%arg0: i32) -> (i32, i32) {
    %c0_i32 = arith.constant 0 : i32
    %c0_i32_0 = arith.constant 0 : i32
    %c0_i32_1 = arith.constant 0 : i32
    return %c0_i32, %c0_i32_0 : i32, i32
  }
  func.func @transform_4(%arg0: i32) -> (i32, i32) {
    %c0_i32 = arith.constant 0 : i32
    %c0_i32_0 = arith.constant 0 : i32
    %c0_i32_1 = arith.constant 0 : i32
    return %c0_i32, %c0_i32_0 : i32, i32
  }
  func.func @transform_5(%arg0: i32) -> (i32, i32) {
    %c0_i32 = arith.constant 0 : i32
    %c0_i32_0 = arith.constant 0 : i32
    %c0_i32_1 = arith.constant 0 : i32
    return %c0_i32, %c0_i32_0 : i32, i32
  }
  func.func @transform_6(%arg0: i32) -> (i32, i32) {
    %c0_i32 = arith.constant 0 : i32
    %c0_i32_0 = arith.constant 0 : i32
    %c0_i32_1 = arith.constant 0 : i32
    return %c0_i32, %c0_i32_0 : i32, i32
  }
  func.func @transform_7(%arg0: i32) -> (i32, i32) {
    %c0_i32 = arith.constant 0 : i32
    %c0_i32_0 = arith.constant 0 : i32
    %c0_i32_1 = arith.constant 0 : i32
    return %c0_i32, %c0_i32_0 : i32, i32
  }
  func.func @transform_8(%arg0: i32) -> (i32, i32) {
    %c0_i32 = arith.constant 0 : i32
    %c0_i32_0 = arith.constant 0 : i32
    %c0_i32_1 = arith.constant 0 : i32
    return %c0_i32, %c0_i32_0 : i32, i32
  }
  func.func @transform_9(%arg0: i32) -> (i32, i32) {
    %c0_i32 = arith.constant 0 : i32
    %c0_i32_0 = arith.constant 0 : i32
    %c0_i32_1 = arith.constant 0 : i32
    return %c0_i32, %c0_i32_0 : i32, i32
  }
  func.func @transform_10(%arg0: i32) -> (i32, i32) {
    %c0_i32 = arith.constant 0 : i32
    %c0_i32_0 = arith.constant 0 : i32
    %c0_i32_1 = arith.constant 0 : i32
    return %c0_i32, %c0_i32_0 : i32, i32
  }
  func.func @transform_11(%arg0: i32) -> (i32, i32) {
    %c0_i32 = arith.constant 0 : i32
    %c0_i32_0 = arith.constant 0 : i32
    return %arg0, %c0_i32 : i32, i32
  }
}

</mosaic_0001>

<llo_original>
// kernel: topic_cnn_forward.1
$region0: #{topic_cnn_forward.1}
  #allocation0 [shape = 'u32[]', space=smem, size = 0x4, offset = 0x4, fixed_abs, tag = 'smem constant byte address 0x4 - core index']
  #allocation1 [shape = 'u32[144,128]{1,0:T(1,128)}', space=vmem, size = 0x12000, scoped, tag = 'internal scratch']
  %s0 = inlined_call_operand.vmem [shape: f32[128,128], index: 0, kind: input, shape index: {}]
  %s1 = inlined_call_operand.vmem [shape: bf16[384,128], index: 1, kind: input, shape index: {}]
  %s2 = inlined_call_operand.vmem [shape: bf16[512,128], index: 2, kind: input, shape index: {}]
  %s3 = inlined_call_operand.vmem [shape: bf16[640,128], index: 3, kind: input, shape index: {}]
  %s4 = inlined_call_operand.hbm [shape: f32[1,128], index: 4, kind: input, shape index: {}]
  %s5 = inlined_call_operand.hbm [shape: f32[1,128], index: 5, kind: input, shape index: {}]
  %s6 = inlined_call_operand.vmem [shape: f32[1,128], index: 6, kind: input, shape index: {}]
  %s7 = inlined_call_operand.vmem [shape: bf16[384,128], index: 7, kind: input, shape index: {}]
  %s8 = inlined_call_operand.vmem [shape: f32[1,128], index: 8, kind: input, shape index: {}]
  %s9 = inlined_call_operand.vmem [shape: bf16[128,128], index: 9, kind: input, shape index: {}]
  %s10 = inlined_call_operand.vmem [shape: f32[1,128], index: 10, kind: input, shape index: {}]
  %s11 = inlined_call_operand.vmem [shape: f32[8,128], index: 11, kind: output, shape index: {}]
  %s12 = sld [smem:[#allocation0]]
  $region62: #{topic_cnn_forward.1} parent=0
    _
  %s14 = ssub.s32 1, %s12
  %s15 = scalar_select 0, %s14, %s12
  $region1: #{topic_cnn_forward.1} parent=0
    #allocation2 [shape = 'u8[512]{0}', space=vmem, size = 0x400, scoped, tag = 'input window, operand 4, single buffered']
    #allocation3 [shape = 's32[1]{0}', space=sflag, size = 0x4, scoped, tag = 'scoped memory for topic_cnn_forward.1']
    #allocation4 [shape = 'u8[512]{0}', space=vmem, size = 0x400, scoped, tag = 'input window, operand 5, single buffered']
    #allocation5 [shape = 's32[1]{0}', space=sflag, size = 0x4, scoped, tag = 'scoped memory for topic_cnn_forward.1']
    %16 = vsyncpa [#allocation3], 0
    %17 = vsyncpa [#allocation5], 0
    // Predicated region
    $region2: #{topic_cnn_forward.1} parent=1 // pred_check
      _
    $region3: #{topic_cnn_forward.1} parent=1 // pred_check_branch
      %19 = sbr.rel (0) target = $region5
    $region4: #{topic_cnn_forward.1} parent=1 // pred_region
      _
    $region5: #{topic_cnn_forward.1} parent=1 // pred_fallthru
      _
    // Predicated region
    $region6: #{topic_cnn_forward.1} parent=1 // pred_check
      _
    $region7: #{topic_cnn_forward.1} parent=1 // pred_check_branch
      %21 = sbr.rel (0) target = $region9
    $region8: #{topic_cnn_forward.1} parent=1 // pred_region
      _
    $region9: #{topic_cnn_forward.1} parent=1 // pred_fallthru
      _
    // Predicated region
    $region10: #{topic_cnn_forward.1} parent=1 // pred_check
      _
    $region11: #{topic_cnn_forward.1} parent=1 // pred_check_branch
      %23 = sbr.rel (0) target = $region13
    $region12: #{topic_cnn_forward.1} parent=1 // pred_region
      _
    $region13: #{topic_cnn_forward.1} parent=1 // pred_fallthru
      _
    // Predicated region
    $region14: #{topic_cnn_forward.1} parent=1 // pred_check
      _
    $region15: #{topic_cnn_forward.1} parent=1 // pred_check_branch
      %25 = sbr.rel (0) target = $region17
    $region16: #{topic_cnn_forward.1} parent=1 // pred_region
      _
    $region17: #{topic_cnn_forward.1} parent=1 // pred_fallthru
      _
    // Predicated region
    $region18: #{topic_cnn_forward.1} parent=1 // pred_check
      _
    $region19: #{topic_cnn_forward.1} parent=1 // pred_check_branch
      %27 = sbr.rel (0) target = $region21
    $region20: #{topic_cnn_forward.1} parent=1 // pred_region
      %s29 = ssub.s32 16, 16
      %30 = vsyncadd [#allocation3], %s29
      %s32 = sshll.u32 [#allocation2], 4
      %s33 = int_to_ptr.vmem [resolvable:$true] %s32
      %35 = dma.hbm_to_vmem [thread:$0]  %s4, 16, %s33, [#allocation3]
    $region21: #{topic_cnn_forward.1} parent=1 // pred_fallthru
      _
    // Predicated region
    $region22: #{topic_cnn_forward.1} parent=1 // pred_check
      _
    $region23: #{topic_cnn_forward.1} parent=1 // pred_check_branch
      %37 = sbr.rel (0) target = $region25
    $region24: #{topic_cnn_forward.1} parent=1 // pred_region
      %s39 = ssub.s32 16, 16
      %40 = vsyncadd [#allocation5], %s39
      %s42 = sshll.u32 [#allocation4], 4
      %s43 = int_to_ptr.vmem [resolvable:$true] %s42
      %45 = dma.hbm_to_vmem [thread:$0]  %s5, 16, %s43, [#allocation5]
    $region25: #{topic_cnn_forward.1} parent=1 // pred_fallthru
      _
    // Predicated region
    $region26: #{topic_cnn_forward.1} parent=1 // pred_check
      _
    $region27: #{topic_cnn_forward.1} parent=1 // pred_check_branch
      %47 = sbr.rel (0) target = $region29
    $region28: #{topic_cnn_forward.1} parent=1 // pred_region
      _
    $region29: #{topic_cnn_forward.1} parent=1 // pred_fallthru
      _
    // Predicated region
    $region30: #{topic_cnn_forward.1} parent=1 // pred_check
      _
    $region31: #{topic_cnn_forward.1} parent=1 // pred_check_branch
      %49 = sbr.rel (0) target = $region33
    $region32: #{topic_cnn_forward.1} parent=1 // pred_region
      _
    $region33: #{topic_cnn_forward.1} parent=1 // pred_fallthru
      _
    // Predicated region
    $region34: #{topic_cnn_forward.1} parent=1 // pred_check
      _
    $region35: #{topic_cnn_forward.1} parent=1 // pred_check_branch
      %51 = sbr.rel (0) target = $region37
    $region36: #{topic_cnn_forward.1} parent=1 // pred_region
      _
    $region37: #{topic_cnn_forward.1} parent=1 // pred_fallthru
      _
    // Predicated region
    $region38: #{topic_cnn_forward.1} parent=1 // pred_check
      _
    $region39: #{topic_cnn_forward.1} parent=1 // pred_check_branch
      %53 = sbr.rel (0) target = $region41
    $region40: #{topic_cnn_forward.1} parent=1 // pred_region
      _
    $region41: #{topic_cnn_forward.1} parent=1 // pred_fallthru
      _
    // Predicated region
    $region42: #{topic_cnn_forward.1} parent=1 // pred_check
      _
    $region43: #{topic_cnn_forward.1} parent=1 // pred_check_branch
      %55 = sbr.rel (0) target = $region45
    $region44: #{topic_cnn_forward.1} parent=1 // pred_region
      _
    $region45: #{topic_cnn_forward.1} parent=1 // pred_fallthru
      _
    // Predicated region
    $region46: #{topic_cnn_forward.1} parent=1 // pred_check
      _
    $region47: #{topic_cnn_forward.1} parent=1 // pred_check_branch
      %57 = sbr.rel (0) target = $region49
    $region48: #{topic_cnn_forward.1} parent=1 // pred_region
      %58 = dma.done [#allocation3], 16
    $region49: #{topic_cnn_forward.1} parent=1 // pred_fallthru
      _
    // Predicated region
    $region50: #{topic_cnn_forward.1} parent=1 // pred_check
      _
    $region51: #{topic_cnn_forward.1} parent=1 // pred_check_branch
      %60 = sbr.rel (0) target = $region53
    $region52: #{topic_cnn_forward.1} parent=1 // pred_region
      %61 = dma.done [#allocation5], 16
    $region53: #{topic_cnn_forward.1} parent=1 // pred_fallthru
      _
    %v63 = vld [vmem:[%s0] sm:$0xff]
    %v64 = vld [vmem:[%s0 + $0x8] sm:$0xff]
    %v65 = vld [vmem:[%s0 + $0x10] sm:$0xff]
    %v66 = vld [vmem:[%s0 + $0x18] sm:$0xff]
    %v67 = vld [vmem:[%s0 + $0x20] sm:$0xff]
    %v68 = vld [vmem:[%s0 + $0x28] sm:$0xff]
    %v69 = vld [vmem:[%s0 + $0x30] sm:$0xff]
    %v70 = vld [vmem:[%s0 + $0x38] sm:$0xff]
    %v71 = vld [vmem:[%s0 + $0x40] sm:$0xff]
    %v72 = vld [vmem:[%s0 + $0x48] sm:$0xff]
    %v73 = vld [vmem:[%s0 + $0x50] sm:$0xff]
    %v74 = vld [vmem:[%s0 + $0x58] sm:$0xff]
    %v75 = vld [vmem:[%s0 + $0x60] sm:$0xff]
    %v76 = vld [vmem:[%s0 + $0x68] sm:$0xff]
    %v77 = vld [vmem:[%s0 + $0x70] sm:$0xff]
    %v78 = vld [vmem:[%s0 + $0x78] sm:$0xff]
    %v79 = vpack.c.bf16 %v64, %v63
    %v80 = vpack.c.bf16 %v66, %v65
    %v81 = vpack.c.bf16 %v68, %v67
    %v82 = vpack.c.bf16 %v70, %v69
    %v83 = vpack.c.bf16 %v72, %v71
    %v84 = vpack.c.bf16 %v74, %v73
    %v85 = vpack.c.bf16 %v76, %v75
    %v86 = vpack.c.bf16 %v78, %v77
    %v87 = vrot.slane %v63, 1
    %v88 = vrot.slane %v64, 1
    %v89 = vrot.slane %v65, 1
    %v90 = vrot.slane %v66, 1
    %v91 = vrot.slane %v67, 1
    %v92 = vrot.slane %v68, 1
    %v93 = vrot.slane %v69, 1
    %v94 = vrot.slane %v70, 1
    %v95 = vrot.slane %v71, 1
    %v96 = vrot.slane %v72, 1
    %v97 = vrot.slane %v73, 1
    %v98 = vrot.slane %v74, 1
    %v99 = vrot.slane %v75, 1
    %v100 = vrot.slane %v76, 1
    %v101 = vrot.slane %v77, 1
    %v102 = vrot.slane %v78, 1
    %v103 = vlaneseq
    %v104 = vshrl.u32 %v103, 7
    %vm105 = vcmp.lt.s32.totalorder %v104, 7
    %v106 = vsel %vm105, %v101, %v102
    %v107 = vsel %vm105, %v100, %v101
    %v108 = vsel %vm105, %v99, %v100
    %v109 = vsel %vm105, %v98, %v99
    %v110 = vsel %vm105, %v97, %v98
    %v111 = vsel %vm105, %v96, %v97
    %v112 = vsel %vm105, %v95, %v96
    %v113 = vsel %vm105, %v94, %v95
    %v114 = vsel %vm105, %v93, %v94
    %v115 = vsel %vm105, %v92, %v93
    %v116 = vsel %vm105, %v91, %v92
    %v117 = vsel %vm105, %v90, %v91
    %v118 = vsel %vm105, %v89, %v90
    %v119 = vsel %vm105, %v88, %v89
    %v120 = vsel %vm105, %v87, %v88
    %v121 = vsel %vm105, %v102, %v87
    %v122 = vpack.c.bf16 %v119, %v120
    %v123 = vpack.c.bf16 %v117, %v118
    %v124 = vpack.c.bf16 %v115, %v116
    %v125 = vpack.c.bf16 %v113, %v114
    %v126 = vpack.c.bf16 %v111, %v112
    %v127 = vpack.c.bf16 %v109, %v110
    %v128 = vpack.c.bf16 %v107, %v108
    %v129 = vpack.c.bf16 %v121, %v106
    %v130 = vrot.slane %v63, 2
    %v131 = vrot.slane %v64, 2
    %v132 = vrot.slane %v65, 2
    %v133 = vrot.slane %v66, 2
    %v134 = vrot.slane %v67, 2
    %v135 = vrot.slane %v68, 2
    %v136 = vrot.slane %v69, 2
    %v137 = vrot.slane %v70, 2
    %v138 = vrot.slane %v71, 2
    %v139 = vrot.slane %v72, 2
    %v140 = vrot.slane %v73, 2
    %v141 = vrot.slane %v74, 2
    %v142 = vrot.slane %v75, 2
    %v143 = vrot.slane %v76, 2
    %v144 = vrot.slane %v77, 2
    %v145 = vrot.slane %v78, 2
    %vm146 = vcmp.lt.s32.totalorder %v104, 6
    %v147 = vsel %vm146, %v144, %v145
    %v148 = vsel %vm146, %v143, %v144
    %v149 = vsel %vm146, %v142, %v143
    %v150 = vsel %vm146, %v141, %v142
    %v151 = vsel %vm146, %v140, %v141
    %v152 = vsel %vm146, %v139, %v140
    %v153 = vsel %vm146, %v138, %v139
    %v154 = vsel %vm146, %v137, %v138
    %v155 = vsel %vm146, %v136, %v137
    %v156 = vsel %vm146, %v135, %v136
    %v157 = vsel %vm146, %v134, %v135
    %v158 = vsel %vm146, %v133, %v134
    %v159 = vsel %vm146, %v132, %v133
    %v160 = vsel %vm146, %v131, %v132
    %v161 = vsel %vm146, %v130, %v131
    %v162 = vsel %vm146, %v145, %v130
    %v163 = vpack.c.bf16 %v160, %v161
    %v164 = vpack.c.bf16 %v158, %v159
    %v165 = vpack.c.bf16 %v156, %v157
    %v166 = vpack.c.bf16 %v154, %v155
    %v167 = vpack.c.bf16 %v152, %v153
    %v168 = vpack.c.bf16 %v150, %v151
    %v169 = vpack.c.bf16 %v148, %v149
    %v170 = vpack.c.bf16 %v162, %v147
    %v171 = vrot.slane %v63, 3
    %v172 = vrot.slane %v64, 3
    %v173 = vrot.slane %v65, 3
    %v174 = vrot.slane %v66, 3
    %v175 = vrot.slane %v67, 3
    %v176 = vrot.slane %v68, 3
    %v177 = vrot.slane %v69, 3
    %v178 = vrot.slane %v70, 3
    %v179 = vrot.slane %v71, 3
    %v180 = vrot.slane %v72, 3
    %v181 = vrot.slane %v73, 3
    %v182 = vrot.slane %v74, 3
    %v183 = vrot.slane %v75, 3
    %v184 = vrot.slane %v76, 3
    %v185 = vrot.slane %v77, 3
    %v186 = vrot.slane %v78, 3
    %vm187 = vcmp.lt.s32.totalorder %v104, 5
    %v188 = vsel %vm187, %v185, %v186
    %v189 = vsel %vm187, %v184, %v185
    %v190 = vsel %vm187, %v183, %v184
    %v191 = vsel %vm187, %v182, %v183
    %v192 = vsel %vm187, %v181, %v182
    %v193 = vsel %vm187, %v180, %v181
    %v194 = vsel %vm187, %v179, %v180
    %v195 = vsel %vm187, %v178, %v179
    %v196 = vsel %vm187, %v177, %v178
    %v197 = vsel %vm187, %v176, %v177
    %v198 = vsel %vm187, %v175, %v176
    %v199 = vsel %vm187, %v174, %v175
    %v200 = vsel %vm187, %v173, %v174
    %v201 = vsel %vm187, %v172, %v173
    %v202 = vsel %vm187, %v171, %v172
    %v203 = vsel %vm187, %v186, %v171
    %v204 = vpack.c.bf16 %v201, %v202
    %v205 = vpack.c.bf16 %v199, %v200
    %v206 = vpack.c.bf16 %v197, %v198
    %v207 = vpack.c.bf16 %v195, %v196
    %v208 = vpack.c.bf16 %v193, %v194
    %v209 = vpack.c.bf16 %v191, %v192
    %v210 = vpack.c.bf16 %v189, %v190
    %v211 = vpack.c.bf16 %v203, %v188
    %v212 = vrot.slane %v63, 4
    %v213 = vrot.slane %v64, 4
    %v214 = vrot.slane %v65, 4
    %v215 = vrot.slane %v66, 4
    %v216 = vrot.slane %v67, 4
    %v217 = vrot.slane %v68, 4
    %v218 = vrot.slane %v69, 4
    %v219 = vrot.slane %v70, 4
    %v220 = vrot.slane %v71, 4
    %v221 = vrot.slane %v72, 4
    %v222 = vrot.slane %v73, 4
    %v223 = vrot.slane %v74, 4
    %v224 = vrot.slane %v75, 4
    %v225 = vrot.slane %v76, 4
    %v226 = vrot.slane %v77, 4
    %v227 = vrot.slane %v78, 4
    %vm228 = vcmp.lt.s32.totalorder %v104, 4
    %v229 = vsel %vm228, %v226, %v227
    %v230 = vsel %vm228, %v225, %v226
    %v231 = vsel %vm228, %v224, %v225
    %v232 = vsel %vm228, %v223, %v224
    %v233 = vsel %vm228, %v222, %v223
    %v234 = vsel %vm228, %v221, %v222
    %v235 = vsel %vm228, %v220, %v221
    %v236 = vsel %vm228, %v219, %v220
    %v237 = vsel %vm228, %v218, %v219
    %v238 = vsel %vm228, %v217, %v218
    %v239 = vsel %vm228, %v216, %v217
    %v240 = vsel %vm228, %v215, %v216
    %v241 = vsel %vm228, %v214, %v215
    %v242 = vsel %vm228, %v213, %v214
    %v243 = vsel %vm228, %v212, %v213
    %v244 = vsel %vm228, %v227, %v212
    %v245 = vpack.c.bf16 %v242, %v243
    %v246 = vpack.c.bf16 %v240, %v241
    %v247 = vpack.c.bf16 %v238, %v239
    %v248 = vpack.c.bf16 %v236, %v237
    %v249 = vpack.c.bf16 %v234, %v235
    %v250 = vpack.c.bf16 %v232, %v233
    %v251 = vpack.c.bf16 %v230, %v231
    %v252 = vpack.c.bf16 %v244, %v229
    %v253 = vld [vmem:[%s1] sm:$0xf]
    %v254 = vld [vmem:[%s1 + $0x4] sm:$0xf]
    %v255 = vld [vmem:[%s1 + $0x8] sm:$0xf]
    %v256 = vld [vmem:[%s1 + $0xc] sm:$0xf]
    %v257 = vld [vmem:[%s1 + $0x10] sm:$0xf]
    %v258 = vld [vmem:[%s1 + $0x14] sm:$0xf]
    %v259 = vld [vmem:[%s1 + $0x18] sm:$0xf]
    %v260 = vld [vmem:[%s1 + $0x1c] sm:$0xf]
    %v261 = vld [vmem:[%s1 + $0x20] sm:$0xf]
    %v262 = vld [vmem:[%s1 + $0x24] sm:$0xf]
    %v263 = vld [vmem:[%s1 + $0x28] sm:$0xf]
    %v264 = vld [vmem:[%s1 + $0x2c] sm:$0xf]
    %v265 = vld [vmem:[%s1 + $0x30] sm:$0xf]
    %v266 = vld [vmem:[%s1 + $0x34] sm:$0xf]
    %v267 = vld [vmem:[%s1 + $0x38] sm:$0xf]
    %v268 = vld [vmem:[%s1 + $0x3c] sm:$0xf]
    %v269 = vld [vmem:[%s1 + $0x40] sm:$0xf]
    %v270 = vld [vmem:[%s1 + $0x44] sm:$0xf]
    %v271 = vld [vmem:[%s1 + $0x48] sm:$0xf]
    %v272 = vld [vmem:[%s1 + $0x4c] sm:$0xf]
    %v273 = vld [vmem:[%s1 + $0x50] sm:$0xf]
    %v274 = vld [vmem:[%s1 + $0x54] sm:$0xf]
    %v275 = vld [vmem:[%s1 + $0x58] sm:$0xf]
    %v276 = vld [vmem:[%s1 + $0x5c] sm:$0xf]
    %v277 = vld [vmem:[%s1 + $0x60] sm:$0xf]
    %v278 = vld [vmem:[%s1 + $0x64] sm:$0xf]
    %v279 = vld [vmem:[%s1 + $0x68] sm:$0xf]
    %v280 = vld [vmem:[%s1 + $0x6c] sm:$0xf]
    %v281 = vld [vmem:[%s1 + $0x70] sm:$0xf]
    %v282 = vld [vmem:[%s1 + $0x74] sm:$0xf]
    %v283 = vld [vmem:[%s1 + $0x78] sm:$0xf]
    %v284 = vld [vmem:[%s1 + $0x7c] sm:$0xf]
    %v285 = vld [vmem:[%s1 + $0x80] sm:$0xf]
    %v286 = vld [vmem:[%s1 + $0x84] sm:$0xf]
    %v287 = vld [vmem:[%s1 + $0x88] sm:$0xf]
    %v288 = vld [vmem:[%s1 + $0x8c] sm:$0xf]
    %v289 = vld [vmem:[%s1 + $0x90] sm:$0xf]
    %v290 = vld [vmem:[%s1 + $0x94] sm:$0xf]
    %v291 = vld [vmem:[%s1 + $0x98] sm:$0xf]
    %v292 = vld [vmem:[%s1 + $0x9c] sm:$0xf]
    %v293 = vld [vmem:[%s1 + $0xa0] sm:$0xf]
    %v294 = vld [vmem:[%s1 + $0xa4] sm:$0xf]
    %v295 = vld [vmem:[%s1 + $0xa8] sm:$0xf]
    %v296 = vld [vmem:[%s1 + $0xac] sm:$0xf]
    %v297 = vld [vmem:[%s1 + $0xb0] sm:$0xf]
    %v298 = vld [vmem:[%s1 + $0xb4] sm:$0xf]
    %v299 = vld [vmem:[%s1 + $0xb8] sm:$0xf]
    %v300 = vld [vmem:[%s1 + $0xbc] sm:$0xf]
    %v349 = vunpack.c.l.b16 %v253
    %v350 = vunpack.c.l.b16 %v254
    %v351 = vunpack.c.l.b16 %v255
    %v352 = vunpack.c.l.b16 %v256
    %v353 = vunpack.c.l.b16 %v257
    %v354 = vunpack.c.l.b16 %v258
    %v355 = vunpack.c.l.b16 %v259
    %v356 = vunpack.c.l.b16 %v260
    %v357 = vunpack.c.l.b16 %v261
    %v358 = vunpack.c.l.b16 %v262
    %v359 = vunpack.c.l.b16 %v263
    %v360 = vunpack.c.l.b16 %v264
    %v361 = vunpack.c.l.b16 %v265
    %v362 = vunpack.c.l.b16 %v266
    %v363 = vunpack.c.l.b16 %v267
    %v364 = vunpack.c.l.b16 %v268
    %v365 = vunpack.c.l.b16 %v269
    %v366 = vunpack.c.l.b16 %v270
    %v367 = vunpack.c.l.b16 %v271
    %v368 = vunpack.c.l.b16 %v272
    %v369 = vunpack.c.l.b16 %v273
    %v370 = vunpack.c.l.b16 %v274
    %v371 = vunpack.c.l.b16 %v275
    %v372 = vunpack.c.l.b16 %v276
    %v373 = vunpack.c.l.b16 %v277
    %v374 = vunpack.c.l.b16 %v278
    %v375 = vunpack.c.l.b16 %v279
    %v376 = vunpack.c.l.b16 %v280
    %v377 = vunpack.c.l.b16 %v281
    %v378 = vunpack.c.l.b16 %v282
    %v379 = vunpack.c.l.b16 %v283
    %v380 = vunpack.c.l.b16 %v284
    %v381 = vunpack.c.l.b16 %v285
    %v382 = vunpack.c.l.b16 %v286
    %v383 = vunpack.c.l.b16 %v287
    %v384 = vunpack.c.l.b16 %v288
    %v385 = vunpack.c.l.b16 %v289
    %v386 = vunpack.c.l.b16 %v290
    %v387 = vunpack.c.l.b16 %v291
    %v388 = vunpack.c.l.b16 %v292
    %v389 = vunpack.c.l.b16 %v293
    %v390 = vunpack.c.l.b16 %v294
    %v391 = vunpack.c.l.b16 %v295
    %v392 = vunpack.c.l.b16 %v296
    %v393 = vunpack.c.l.b16 %v297
    %v394 = vunpack.c.l.b16 %v298
    %v395 = vunpack.c.l.b16 %v299
    %v396 = vunpack.c.l.b16 %v300
    %v397 = vpack.c.b16 %v350, %v349
    %v398 = vpack.c.b16 %v352, %v351
    %v399 = vpack.c.b16 %v354, %v353
    %v400 = vpack.c.b16 %v356, %v355
    %v401 = vpack.c.b16 %v358, %v357
    %v402 = vpack.c.b16 %v360, %v359
    %v403 = vpack.c.b16 %v362, %v361
    %v404 = vpack.c.b16 %v364, %v363
    %v405 = vpack.c.b16 %v366, %v365
    %v406 = vpack.c.b16 %v368, %v367
    %v407 = vpack.c.b16 %v370, %v369
    %v408 = vpack.c.b16 %v372, %v371
    %v409 = vpack.c.b16 %v374, %v373
    %v410 = vpack.c.b16 %v376, %v375
    %v411 = vpack.c.b16 %v378, %v377
    %v412 = vpack.c.b16 %v380, %v379
    %v413 = vpack.c.b16 %v382, %v381
    %v414 = vpack.c.b16 %v384, %v383
    %v415 = vpack.c.b16 %v386, %v385
    %v416 = vpack.c.b16 %v388, %v387
    %v417 = vpack.c.b16 %v390, %v389
    %v418 = vpack.c.b16 %v392, %v391
    %v419 = vpack.c.b16 %v394, %v393
    %v420 = vpack.c.b16 %v396, %v395
    %445 = vmatprep.subr.bf16.mxu0 0
    %446 = vmatpush1.bf16.msra.mxu0 %v397
    %447 = vmatprep.subr.bf16.mxu0 0
    %448 = vmatpush1.bf16.msra.mxu0 %v398
    %449 = vmatprep.subr.bf16.mxu0 0
    %450 = vmatpush1.bf16.msra.mxu0 %v399
    %451 = vmatprep.subr.bf16.mxu0 0
    %452 = vmatpush1.bf16.msra.mxu0 %v400
    %453 = vmatprep.subr.bf16.mxu0 0
    %454 = vmatpush1.bf16.msra.mxu0 %v401
    %455 = vmatprep.subr.bf16.mxu0 0
    %456 = vmatpush1.bf16.msra.mxu0 %v402
    %457 = vmatprep.subr.bf16.mxu0 0
    %458 = vmatpush1.bf16.msra.mxu0 %v403
    %459 = vmatprep.subr.bf16.mxu0 0
    %460 = vmatpush1.bf16.msra.mxu0 %v404
    %461 = vmatprep.subr.bf16.mxu0 0
    %462 = vmatpush1.bf16.msra.mxu0 %v405
    %463 = vmatprep.subr.bf16.mxu0 0
    %464 = vmatpush1.bf16.msra.mxu0 %v406
    %465 = vmatprep.subr.bf16.mxu0 0
    %466 = vmatpush1.bf16.msra.mxu0 %v407
    %467 = vmatprep.subr.bf16.mxu0 0
    %468 = vmatpush1.bf16.msra.mxu0 %v408
    %469 = vmatprep.subr.bf16.mxu0 0
    %470 = vmatpush1.bf16.msra.mxu0 %v409
    %471 = vmatprep.subr.bf16.mxu0 0
    %472 = vmatpush1.bf16.msra.mxu0 %v410
    %473 = vmatprep.subr.bf16.mxu0 0
    %474 = vmatpush1.bf16.msra.mxu0 %v411
    %475 = vmatprep.subr.bf16.mxu0 0
    %476 = vmatpush1.bf16.msra.mxu0 %v412
    %477 = vmatprep.mubr.bf16.mxu0 %v122
    %478 = vmatmul.mubr.bf16.gmra.mrb[0].mxu0 %v79
    %v479 = vpop.f32.mrb[0].mxu0
    %v480 = vadd.f32 0.0, %v479
    %v481 = vpop.f32.mrb[0].mxu0
    %v482 = vpop.f32.mrb[0].mxu0
    %v483 = vadd.f32 0.0, %v482
    %v484 = vpop.f32.mrb[0].mxu0
    %485 = vmatprep.mubr.bf16.mxu0 %v123
    %486 = vmatmul.mubr.bf16.gmra.mrb[0].mxu0 %v80
    %v487 = vpop.f32.mrb[0].mxu0
    %v488 = vadd.f32 0.0, %v487
    %v489 = vpop.f32.mrb[0].mxu0
    %v490 = vpop.f32.mrb[0].mxu0
    %v491 = vadd.f32 0.0, %v490
    %v492 = vpop.f32.mrb[0].mxu0
    %493 = vmatprep.mubr.bf16.mxu0 %v124
    %494 = vmatmul.mubr.bf16.gmra.mrb[0].mxu0 %v81
    %v495 = vpop.f32.mrb[0].mxu0
    %v496 = vadd.f32 0.0, %v495
    %v497 = vpop.f32.mrb[0].mxu0
    %v498 = vpop.f32.mrb[0].mxu0
    %v499 = vadd.f32 0.0, %v498
    %v500 = vpop.f32.mrb[0].mxu0
    %501 = vmatprep.mubr.bf16.mxu0 %v125
    %502 = vmatmul.mubr.bf16.gmra.mrb[0].mxu0 %v82
    %v503 = vpop.f32.mrb[0].mxu0
    %v504 = vadd.f32 0.0, %v503
    %v505 = vpop.f32.mrb[0].mxu0
    %v506 = vpop.f32.mrb[0].mxu0
    %v507 = vadd.f32 0.0, %v506
    %v508 = vpop.f32.mrb[0].mxu0
    %509 = vmatprep.mubr.bf16.mxu0 %v126
    %510 = vmatmul.mubr.bf16.gmra.mrb[0].mxu0 %v83
    %v511 = vpop.f32.mrb[0].mxu0
    %v512 = vadd.f32 0.0, %v511
    %v513 = vpop.f32.mrb[0].mxu0
    %v514 = vpop.f32.mrb[0].mxu0
    %v515 = vadd.f32 0.0, %v514
    %v516 = vpop.f32.mrb[0].mxu0
    %517 = vmatprep.mubr.bf16.mxu0 %v127
    %518 = vmatmul.mubr.bf16.gmra.mrb[0].mxu0 %v84
    %v519 = vpop.f32.mrb[0].mxu0
    %v520 = vadd.f32 0.0, %v519
    %v521 = vpop.f32.mrb[0].mxu0
    %v522 = vpop.f32.mrb[0].mxu0
    %v523 = vadd.f32 0.0, %v522
    %v524 = vpop.f32.mrb[0].mxu0
    %525 = vmatprep.mubr.bf16.mxu0 %v128
    %526 = vmatmul.mubr.bf16.gmra.mrb[0].mxu0 %v85
    %v527 = vpop.f32.mrb[0].mxu0
    %v528 = vadd.f32 0.0, %v527
    %v529 = vpop.f32.mrb[0].mxu0
    %v530 = vpop.f32.mrb[0].mxu0
    %v531 = vadd.f32 0.0, %v530
    %v532 = vpop.f32.mrb[0].mxu0
    %533 = vmatprep.mubr.bf16.mxu0 %v129
    %534 = vmatmul.mubr.bf16.gmra.mrb[0].mxu0 %v86
    %v535 = vpop.f32.mrb[0].mxu0
    %v536 = vadd.f32 0.0, %v535
    %v537 = vpop.f32.mrb[0].mxu0
    %v538 = vpop.f32.mrb[0].mxu0
    %v539 = vadd.f32 0.0, %v538
    %v540 = vpop.f32.mrb[0].mxu0
    %541 = vdwg.mxu0
    %542 = vmatprep.subr.bf16.mxu0 0
    %543 = vmatpush1.bf16.msra.mxu0 %v413
    %544 = vmatprep.subr.bf16.mxu0 0
    %545 = vmatpush1.bf16.msra.mxu0 %v414
    %546 = vmatprep.subr.bf16.mxu0 0
    %547 = vmatpush1.bf16.msra.mxu0 %v415
    %548 = vmatprep.subr.bf16.mxu0 0
    %549 = vmatpush1.bf16.msra.mxu0 %v416
    %550 = vmatprep.subr.bf16.mxu0 0
    %551 = vmatpush1.bf16.msra.mxu0 %v417
    %552 = vmatprep.subr.bf16.mxu0 0
    %553 = vmatpush1.bf16.msra.mxu0 %v418
    %554 = vmatprep.subr.bf16.mxu0 0
    %555 = vmatpush1.bf16.msra.mxu0 %v419
    %556 = vmatprep.subr.bf16.mxu0 0
    %557 = vmatpush1.bf16.msra.mxu0 %v420
    %558 = vmatprep.subr.bf16.mxu0 0
    %559 = vmatpush1.bf16.msra.mxu0 0
    %560 = vmatprep.subr.bf16.mxu0 0
    %561 = vmatpush1.bf16.msra.mxu0 0
    %562 = vmatprep.subr.bf16.mxu0 0
    %563 = vmatpush1.bf16.msra.mxu0 0
    %564 = vmatprep.subr.bf16.mxu0 0
    %565 = vmatpush1.bf16.msra.mxu0 0
    %566 = vmatprep.subr.bf16.mxu0 0
    %567 = vmatpush1.bf16.msra.mxu0 0
    %568 = vmatprep.subr.bf16.mxu0 0
    %569 = vmatpush1.bf16.msra.mxu0 0
    %570 = vmatprep.subr.bf16.mxu0 0
    %571 = vmatpush1.bf16.msra.mxu0 0
    %572 = vmatprep.subr.bf16.mxu0 0
    %573 = vmatpush1.bf16.msra.mxu0 0
    %574 = vmatprep.mubr.bf16.mxu0 0
    %575 = vmatmul.mubr.bf16.gmra.mrb[0].mxu0 %v163
    %v576 = vpop.f32.mrb[0].mxu0
    %v577 = vadd.f32 %v480, %v576
    %v578 = vpop.f32.mrb[0].mxu0
    %v579 = vpop.f32.mrb[0].mxu0
    %v580 = vadd.f32 %v483, %v579
    %v581 = vpop.f32.mrb[0].mxu0
    %582 = vmatprep.mubr.bf16.mxu0 0
    %583 = vmatmul.mubr.bf16.gmra.mrb[0].mxu0 %v164
    %v584 = vpop.f32.mrb[0].mxu0
    %v585 = vadd.f32 %v488, %v584
    %v586 = vpop.f32.mrb[0].mxu0
    %v587 = vpop.f32.mrb[0].mxu0
    %v588 = vadd.f32 %v491, %v587
    %v589 = vpop.f32.mrb[0].mxu0
    %590 = vmatprep.mubr.bf16.mxu0 0
    %591 = vmatmul.mubr.bf16.gmra.mrb[0].mxu0 %v165
    %v592 = vpop.f32.mrb[0].mxu0
    %v593 = vadd.f32 %v496, %v592
    %v594 = vpop.f32.mrb[0].mxu0
    %v595 = vpop.f32.mrb[0].mxu0
    %v596 = vadd.f32 %v499, %v595
    %v597 = vpop.f32.mrb[0].mxu0
    %598 = vmatprep.mubr.bf16.mxu0 0
    %599 = vmatmul.mubr.bf16.gmra.mrb[0].mxu0 %v166
    %v600 = vpop.f32.mrb[0].mxu0
    %v601 = vadd.f32 %v504, %v600
    %v602 = vpop.f32.mrb[0].mxu0
    %v603 = vpop.f32.mrb[0].mxu0
    %v604 = vadd.f32 %v507, %v603
    %v605 = vpop.f32.mrb[0].mxu0
    %606 = vmatprep.mubr.bf16.mxu0 0
    %607 = vmatmul.mubr.bf16.gmra.mrb[0].mxu0 %v167
    %v608 = vpop.f32.mrb[0].mxu0
    %v609 = vadd.f32 %v512, %v608
    %v610 = vpop.f32.mrb[0].mxu0
    %v611 = vpop.f32.mrb[0].mxu0
    %v612 = vadd.f32 %v515, %v611
    %v613 = vpop.f32.mrb[0].mxu0
    %614 = vmatprep.mubr.bf16.mxu0 0
    %615 = vmatmul.mubr.bf16.gmra.mrb[0].mxu0 %v168
    %v616 = vpop.f32.mrb[0].mxu0
    %v617 = vadd.f32 %v520, %v616
    %v618 = vpop.f32.mrb[0].mxu0
    %v619 = vpop.f32.mrb[0].mxu0
    %v620 = vadd.f32 %v523, %v619
    %v621 = vpop.f32.mrb[0].mxu0
    %622 = vmatprep.mubr.bf16.mxu0 0
    %623 = vmatmul.mubr.bf16.gmra.mrb[0].mxu0 %v169
    %v624 = vpop.f32.mrb[0].mxu0
    %v625 = vadd.f32 %v528, %v624
    %v626 = vpop.f32.mrb[0].mxu0
    %v627 = vpop.f32.mrb[0].mxu0
    %v628 = vadd.f32 %v531, %v627
    %v629 = vpop.f32.mrb[0].mxu0
    %630 = vmatprep.mubr.bf16.mxu0 0
    %631 = vmatmul.mubr.bf16.gmra.mrb[0].mxu0 %v170
    %v632 = vpop.f32.mrb[0].mxu0
    %v633 = vadd.f32 %v536, %v632
    %v634 = vpop.f32.mrb[0].mxu0
    %v635 = vpop.f32.mrb[0].mxu0
    %v636 = vadd.f32 %v539, %v635
    %v637 = vpop.f32.mrb[0].mxu0
    %638 = vdwg.mxu0
    %v639 = vld [vmem:[#allocation2] sm:$0x1]
    %v641 = vlaneseq
    %v642 = vshrl.u32 %v641, 7
    %v643 = vsub.s32 0, %v642
    %v644 = vrot.slane %v639, %v643
    %v646 = vadd.f32 %v577, %v644
    %v647 = vadd.f32 %v580, %v644
    %v648 = vadd.f32 %v585, %v644
    %v649 = vadd.f32 %v588, %v644
    %v650 = vadd.f32 %v593, %v644
    %v651 = vadd.f32 %v596, %v644
    %v652 = vadd.f32 %v601, %v644
    %v653 = vadd.f32 %v604, %v644
    %v654 = vadd.f32 %v609, %v644
    %v655 = vadd.f32 %v612, %v644
    %v656 = vadd.f32 %v617, %v644
    %v657 = vadd.f32 %v620, %v644
    %v658 = vadd.f32 %v625, %v644
    %v659 = vadd.f32 %v628, %v644
    %v660 = vadd.f32 %v633, %v644
    %v661 = vadd.f32 %v636, %v644
    %v662 = vmax.f32 %v646, 0.0
    %v663 = vmax.f32 %v647, 0.0
    %v664 = vmax.f32 %v648, 0.0
    %v665 = vmax.f32 %v649, 0.0
    %v666 = vmax.f32 %v650, 0.0
    %v667 = vmax.f32 %v651, 0.0
    %v668 = vmax.f32 %v652, 0.0
    %v669 = vmax.f32 %v653, 0.0
    %v670 = vmax.f32 %v654, 0.0
    %v671 = vmax.f32 %v655, 0.0
    %v672 = vmax.f32 %v656, 0.0
    %v673 = vmax.f32 %v657, 0.0
    %v674 = vmax.f32 %v658, 0.0
    %v675 = vmax.f32 %v659, 0.0
    %v676 = vmax.f32 %v660, 0.0
    %v677 = vmax.f32 %v661, 0.0
    %v678 = vadd.s32 %v104, 8
    %vm679 = vcmp.lt.s32.totalorder %v104, 14
    %vm680 = vcmp.lt.s32.totalorder %v678, 14
    %v681 = vsel %vm679, 1, 0
    %v682 = vsel %vm680, 1, 0
    %v683 = vcvt.s32.f32 %v681
    %v684 = vcvt.s32.f32 %v682
    %v685 = vmul.f32 %v662, %v683
    %v686 = vmul.f32 %v663, %v684
    %v687 = vmul.f32 %v664, %v683
    %v688 = vmul.f32 %v665, %v684
    %v689 = vmul.f32 %v666, %v683
    %v690 = vmul.f32 %v667, %v684
    %v691 = vmul.f32 %v668, %v683
    %v692 = vmul.f32 %v669, %v684
    %v693 = vmul.f32 %v670, %v683
    %v694 = vmul.f32 %v671, %v684
    %v695 = vmul.f32 %v672, %v683
    %v696 = vmul.f32 %v673, %v684
    %v697 = vmul.f32 %v674, %v683
    %v698 = vmul.f32 %v675, %v684
    %v699 = vmul.f32 %v676, %v683
    %v700 = vmul.f32 %v677, %v684
    %v701 = vmax.f32 %v685, %v686
    %v702 = vrot.slane %v701, 4
    %v703 = vmax.f32 %v701, %v702
    %v704 = vrot.slane %v703, 2
    %v705 = vmax.f32 %v703, %v704
    %v706 = vrot.slane %v705, 1
    %v707 = vmax.f32 %v705, %v706
    %v708 = vmax.f32 %v687, %v688
    %v709 = vrot.slane %v708, 4
    %v710 = vmax.f32 %v708, %v709
    %v711 = vrot.slane %v710, 2
    %v712 = vmax.f32 %v710, %v711
    %v713 = vrot.slane %v712, 1
    %v714 = vmax.f32 %v712, %v713
    %v715 = vmax.f32 %v689, %v690
    %v716 = vrot.slane %v715, 4
    %v717 = vmax.f32 %v715, %v716
    %v718 = vrot.slane %v717, 2
    %v719 = vmax.f32 %v717, %v718
    %v720 = vrot.slane %v719, 1
    %v721 = vmax.f32 %v719, %v720
    %v722 = vmax.f32 %v691, %v692
    %v723 = vrot.slane %v722, 4
    %v724 = vmax.f32 %v722, %v723
    %v725 = vrot.slane %v724, 2
    %v726 = vmax.f32 %v724, %v725
    %v727 = vrot.slane %v726, 1
    %v728 = vmax.f32 %v726, %v727
    %v729 = vmax.f32 %v693, %v694
    %v730 = vrot.slane %v729, 4
    %v731 = vmax.f32 %v729, %v730
    %v732 = vrot.slane %v731, 2
    %v733 = vmax.f32 %v731, %v732
    %v734 = vrot.slane %v733, 1
    %v735 = vmax.f32 %v733, %v734
    %v736 = vmax.f32 %v695, %v696
    %v737 = vrot.slane %v736, 4
    %v738 = vmax.f32 %v736, %v737
    %v739 = vrot.slane %v738, 2
    %v740 = vmax.f32 %v738, %v739
    %v741 = vrot.slane %v740, 1
    %v742 = vmax.f32 %v740, %v741
    %v743 = vmax.f32 %v697, %v698
    %v744 = vrot.slane %v743, 4
    %v745 = vmax.f32 %v743, %v744
    %v746 = vrot.slane %v745, 2
    %v747 = vmax.f32 %v745, %v746
    %v748 = vrot.slane %v747, 1
    %v749 = vmax.f32 %v747, %v748
    %v750 = vmax.f32 %v699, %v700
    %v751 = vrot.slane %v750, 4
    %v752 = vmax.f32 %v750, %v751
    %v753 = vrot.slane %v752, 2
    %v754 = vmax.f32 %v752, %v753
    %v755 = vrot.slane %v754, 1
    %v756 = vmax.f32 %v754, %v755
    %v757 = vld [vmem:[%s2] sm:$0xf]
    %v758 = vld [vmem:[%s2 + $0x4] sm:$0xf]
    %v759 = vld [vmem:[%s2 + $0x8] sm:$0xf]
    %v760 = vld [vmem:[%s2 + $0xc] sm:$0xf]
    %v761 = vld [vmem:[%s2 + $0x10] sm:$0xf]
    %v762 = vld [vmem:[%s2 + $0x14] sm:$0xf]
    %v763 = vld [vmem:[%s2 + $0x18] sm:$0xf]
    %v764 = vld [vmem:[%s2 + $0x1c] sm:$0xf]
    %v765 = vld [vmem:[%s2 + $0x20] sm:$0xf]
    %v766 = vld [vmem:[%s2 + $0x24] sm:$0xf]
    %v767 = vld [vmem:[%s2 + $0x28] sm:$0xf]
    %v768 = vld [vmem:[%s2 + $0x2c] sm:$0xf]
    %v769 = vld [vmem:[%s2 + $0x30] sm:$0xf]
    %v770 = vld [vmem:[%s2 + $0x34] sm:$0xf]
    %v771 = vld [vmem:[%s2 + $0x38] sm:$0xf]
    %v772 = vld [vmem:[%s2 + $0x3c] sm:$0xf]
    %v773 = vld [vmem:[%s2 + $0x40] sm:$0xf]
    %v774 = vld [vmem:[%s2 + $0x44] sm:$0xf]
    %v775 = vld [vmem:[%s2 + $0x48] sm:$0xf]
    %v776 = vld [vmem:[%s2 + $0x4c] sm:$0xf]
    %v777 = vld [vmem:[%s2 + $0x50] sm:$0xf]
    %v778 = vld [vmem:[%s2 + $0x54] sm:$0xf]
    %v779 = vld [vmem:[%s2 + $0x58] sm:$0xf]
    %v780 = vld [vmem:[%s2 + $0x5c] sm:$0xf]
    %v781 = vld [vmem:[%s2 + $0x60] sm:$0xf]
    %v782 = vld [vmem:[%s2 + $0x64] sm:$0xf]
    %v783 = vld [vmem:[%s2 + $0x68] sm:$0xf]
    %v784 = vld [vmem:[%s2 + $0x6c] sm:$0xf]
    %v785 = vld [vmem:[%s2 + $0x70] sm:$0xf]
    %v786 = vld [vmem:[%s2 + $0x74] sm:$0xf]
    %v787 = vld [vmem:[%s2 + $0x78] sm:$0xf]
    %v788 = vld [vmem:[%s2 + $0x7c] sm:$0xf]
    %v789 = vld [vmem:[%s2 + $0x80] sm:$0xf]
    %v790 = vld [vmem:[%s2 + $0x84] sm:$0xf]
    %v791 = vld [vmem:[%s2 + $0x88] sm:$0xf]
    %v792 = vld [vmem:[%s2 + $0x8c] sm:$0xf]
    %v793 = vld [vmem:[%s2 + $0x90] sm:$0xf]
    %v794 = vld [vmem:[%s2 + $0x94] sm:$0xf]
    %v795 = vld [vmem:[%s2 + $0x98] sm:$0xf]
    %v796 = vld [vmem:[%s2 + $0x9c] sm:$0xf]
    %v797 = vld [vmem:[%s2 + $0xa0] sm:$0xf]
    %v798 = vld [vmem:[%s2 + $0xa4] sm:$0xf]
    %v799 = vld [vmem:[%s2 + $0xa8] sm:$0xf]
    %v800 = vld [vmem:[%s2 + $0xac] sm:$0xf]
    %v801 = vld [vmem:[%s2 + $0xb0] sm:$0xf]
    %v802 = vld [vmem:[%s2 + $0xb4] sm:$0xf]
    %v803 = vld [vmem:[%s2 + $0xb8] sm:$0xf]
    %v804 = vld [vmem:[%s2 + $0xbc] sm:$0xf]
    %v805 = vld [vmem:[%s2 + $0xc0] sm:$0xf]
    %v806 = vld [vmem:[%s2 + $0xc4] sm:$0xf]
    %v807 = vld [vmem:[%s2 + $0xc8] sm:$0xf]
    %v808 = vld [vmem:[%s2 + $0xcc] sm:$0xf]
    %v809 = vld [vmem:[%s2 + $0xd0] sm:$0xf]
    %v810 = vld [vmem:[%s2 + $0xd4] sm:$0xf]
    %v811 = vld [vmem:[%s2 + $0xd8] sm:$0xf]
    %v812 = vld [vmem:[%s2 + $0xdc] sm:$0xf]
    %v813 = vld [vmem:[%s2 + $0xe0] sm:$0xf]
    %v814 = vld [vmem:[%s2 + $0xe4] sm:$0xf]
    %v815 = vld [vmem:[%s2 + $0xe8] sm:$0xf]
    %v816 = vld [vmem:[%s2 + $0xec] sm:$0xf]
    %v817 = vld [vmem:[%s2 + $0xf0] sm:$0xf]
    %v818 = vld [vmem:[%s2 + $0xf4] sm:$0xf]
    %v819 = vld [vmem:[%s2 + $0xf8] sm:$0xf]
    %v820 = vld [vmem:[%s2 + $0xfc] sm:$0xf]
    %v885 = vunpack.c.l.b16 %v757
    %v886 = vunpack.c.l.b16 %v758
    %v887 = vunpack.c.l.b16 %v759
    %v888 = vunpack.c.l.b16 %v760
    %v889 = vunpack.c.l.b16 %v761
    %v890 = vunpack.c.l.b16 %v762
    %v891 = vunpack.c.l.b16 %v763
    %v892 = vunpack.c.l.b16 %v764
    %v893 = vunpack.c.l.b16 %v765
    %v894 = vunpack.c.l.b16 %v766
    %v895 = vunpack.c.l.b16 %v767
    %v896 = vunpack.c.l.b16 %v768
    %v897 = vunpack.c.l.b16 %v769
    %v898 = vunpack.c.l.b16 %v770
    %v899 = vunpack.c.l.b16 %v771
    %v900 = vunpack.c.l.b16 %v772
    %v901 = vunpack.c.l.b16 %v773
    %v902 = vunpack.c.l.b16 %v774
    %v903 = vunpack.c.l.b16 %v775
    %v904 = vunpack.c.l.b16 %v776
    %v905 = vunpack.c.l.b16 %v777
    %v906 = vunpack.c.l.b16 %v778
    %v907 = vunpack.c.l.b16 %v779
    %v908 = vunpack.c.l.b16 %v780
    %v909 = vunpack.c.l.b16 %v781
    %v910 = vunpack.c.l.b16 %v782
    %v911 = vunpack.c.l.b16 %v783
    %v912 = vunpack.c.l.b16 %v784
    %v913 = vunpack.c.l.b16 %v785
    %v914 = vunpack.c.l.b16 %v786
    %v915 = vunpack.c.l.b16 %v787
    %v916 = vunpack.c.l.b16 %v788
    %v917 = vunpack.c.l.b16 %v789
    %v918 = vunpack.c.l.b16 %v790
    %v919 = vunpack.c.l.b16 %v791
    %v920 = vunpack.c.l.b16 %v792
    %v921 = vunpack.c.l.b16 %v793
    %v922 = vunpack.c.l.b16 %v794
    %v923 = vunpack.c.l.b16 %v795
    %v924 = vunpack.c.l.b16 %v796
    %v925 = vunpack.c.l.b16 %v797
    %v926 = vunpack.c.l.b16 %v798
    %v927 = vunpack.c.l.b16 %v799
    %v928 = vunpack.c.l.b16 %v800
    %v929 = vunpack.c.l.b16 %v801
    %v930 = vunpack.c.l.b16 %v802
    %v931 = vunpack.c.l.b16 %v803
    %v932 = vunpack.c.l.b16 %v804
    %v933 = vunpack.c.l.b16 %v805
    %v934 = vunpack.c.l.b16 %v806
    %v935 = vunpack.c.l.b16 %v807
    %v936 = vunpack.c.l.b16 %v808
    %v937 = vunpack.c.l.b16 %v809
    %v938 = vunpack.c.l.b16 %v810
    %v939 = vunpack.c.l.b16 %v811
    %v940 = vunpack.c.l.b16 %v812
    %v941 = vunpack.c.l.b16 %v813
    %v942 = vunpack.c.l.b16 %v814
    %v943 = vunpack.c.l.b16 %v815
    %v944 = vunpack.c.l.b16 %v816
    %v945 = vunpack.c.l.b16 %v817
    %v946 = vunpack.c.l.b16 %v818
    %v947 = vunpack.c.l.b16 %v819
    %v948 = vunpack.c.l.b16 %v820
    %v949 = vpack.c.b16 %v886, %v885
    %v950 = vpack.c.b16 %v888, %v887
    %v951 = vpack.c.b16 %v890, %v889
    %v952 = vpack.c.b16 %v892, %v891
    %v953 = vpack.c.b16 %v894, %v893
    %v954 = vpack.c.b16 %v896, %v895
    %v955 = vpack.c.b16 %v898, %v897
    %v956 = vpack.c.b16 %v900, %v899
    %v957 = vpack.c.b16 %v902, %v901
    %v958 = vpack.c.b16 %v904, %v903
    %v959 = vpack.c.b16 %v906, %v905
    %v960 = vpack.c.b16 %v908, %v907
    %v961 = vpack.c.b16 %v910, %v909
    %v962 = vpack.c.b16 %v912, %v911
    %v963 = vpack.c.b16 %v914, %v913
    %v964 = vpack.c.b16 %v916, %v915
    %v965 = vpack.c.b16 %v918, %v917
    %v966 = vpack.c.b16 %v920, %v919
    %v967 = vpack.c.b16 %v922, %v921
    %v968 = vpack.c.b16 %v924, %v923
    %v969 = vpack.c.b16 %v926, %v925
    %v970 = vpack.c.b16 %v928, %v927
    %v971 = vpack.c.b16 %v930, %v929
    %v972 = vpack.c.b16 %v932, %v931
    %v973 = vpack.c.b16 %v934, %v933
    %v974 = vpack.c.b16 %v936, %v935
    %v975 = vpack.c.b16 %v938, %v937
    %v976 = vpack.c.b16 %v940, %v939
    %v977 = vpack.c.b16 %v942, %v941
    %v978 = vpack.c.b16 %v944, %v943
    %v979 = vpack.c.b16 %v946, %v945
    %v980 = vpack.c.b16 %v948, %v947
    %1013 = vmatprep.subr.bf16.mxu0 0
    %1014 = vmatpush1.bf16.msra.mxu0 %v949
    %1015 = vmatprep.subr.bf16.mxu0 0
    %1016 = vmatpush1.bf16.msra.mxu0 %v950
    %1017 = vmatprep.subr.bf16.mxu0 0
    %1018 = vmatpush1.bf16.msra.mxu0 %v951
    %1019 = vmatprep.subr.bf16.mxu0 0
    %1020 = vmatpush1.bf16.msra.mxu0 %v952
    %1021 = vmatprep.subr.bf16.mxu0 0
    %1022 = vmatpush1.bf16.msra.mxu0 %v953
    %1023 = vmatprep.subr.bf16.mxu0 0
    %1024 = vmatpush1.bf16.msra.mxu0 %v954
    %1025 = vmatprep.subr.bf16.mxu0 0
    %1026 = vmatpush1.bf16.msra.mxu0 %v955
    %1027 = vmatprep.subr.bf16.mxu0 0
    %1028 = vmatpush1.bf16.msra.mxu0 %v956
    %1029 = vmatprep.subr.bf16.mxu0 0
    %1030 = vmatpush1.bf16.msra.mxu0 %v957
    %1031 = vmatprep.subr.bf16.mxu0 0
    %1032 = vmatpush1.bf16.msra.mxu0 %v958
    %1033 = vmatprep.subr.bf16.mxu0 0
    %1034 = vmatpush1.bf16.msra.mxu0 %v959
    %1035 = vmatprep.subr.bf16.mxu0 0
    %1036 = vmatpush1.bf16.msra.mxu0 %v960
    %1037 = vmatprep.subr.bf16.mxu0 0
    %1038 = vmatpush1.bf16.msra.mxu0 %v961
    %1039 = vmatprep.subr.bf16.mxu0 0
    %1040 = vmatpush1.bf16.msra.mxu0 %v962
    %1041 = vmatprep.subr.bf16.mxu0 0
    %1042 = vmatpush1.bf16.msra.mxu0 %v963
    %1043 = vmatprep.subr.bf16.mxu0 0
    %1044 = vmatpush1.bf16.msra.mxu0 %v964
    %1045 = vmatprep.mubr.bf16.mxu0 %v122
    %1046 = vmatmul.mubr.bf16.gmra.mrb[0].mxu0 %v79
    %v1047 = vpop.f32.mrb[0].mxu0
    %v1048 = vadd.f32 0.0, %v1047
    %v1049 = vpop.f32.mrb[0].mxu0
    %v1050 = vpop.f32.mrb[0].mxu0
    %v1051 = vadd.f32 0.0, %v1050
    %v1052 = vpop.f32.mrb[0].mxu0
    %1053 = vmatprep.mubr.bf16.mxu0 %v123
    %1054 = vmatmul.mubr.bf16.gmra.mrb[0].mxu0 %v80
    %v1055 = vpop.f32.mrb[0].mxu0
    %v1056 = vadd.f32 0.0, %v1055
    %v1057 = vpop.f32.mrb[0].mxu0
    %v1058 = vpop.f32.mrb[0].mxu0
    %v1059 = vadd.f32 0.0, %v1058
    %v1060 = vpop.f32.mrb[0].mxu0
    %1061 = vmatprep.mubr.bf16.mxu0 %v124
    %1062 = vmatmul.mubr.bf16.gmra.mrb[0].mxu0 %v81
    %v1063 = vpop.f32.mrb[0].mxu0
    %v1064 = vadd.f32 0.0, %v1063
    %v1065 = vpop.f32.mrb[0].mxu0
    %v1066 = vpop.f32.mrb[0].mxu0
    %v1067 = vadd.f32 0.0, %v1066
    %v1068 = vpop.f32.mrb[0].mxu0
    %1069 = vmatprep.mubr.bf16.mxu0 %v125
    %1070 = vmatmul.mubr.bf16.gmra.mrb[0].mxu0 %v82
    %v1071 = vpop.f32.mrb[0].mxu0
    %v1072 = vadd.f32 0.0, %v1071
    %v1073 = vpop.f32.mrb[0].mxu0
    %v1074 = vpop.f32.mrb[0].mxu0
    %v1075 = vadd.f32 0.0, %v1074
    %v1076 = vpop.f32.mrb[0].mxu0
    %1077 = vmatprep.mubr.bf16.mxu0 %v126
    %1078 = vmatmul.mubr.bf16.gmra.mrb[0].mxu0 %v83
    %v1079 = vpop.f32.mrb[0].mxu0
    %v1080 = vadd.f32 0.0, %v1079
    %v1081 = vpop.f32.mrb[0].mxu0
    %v1082 = vpop.f32.mrb[0].mxu0
    %v1083 = vadd.f32 0.0, %v1082
    %v1084 = vpop.f32.mrb[0].mxu0
    %1085 = vmatprep.mubr.bf16.mxu0 %v127
    %1086 = vmatmul.mubr.bf16.gmra.mrb[0].mxu0 %v84
    %v1087 = vpop.f32.mrb[0].mxu0
    %v1088 = vadd.f32 0.0, %v1087
    %v1089 = vpop.f32.mrb[0].mxu0
    %v1090 = vpop.f32.mrb[0].mxu0
    %v1091 = vadd.f32 0.0, %v1090
    %v1092 = vpop.f32.mrb[0].mxu0
    %1093 = vmatprep.mubr.bf16.mxu0 %v128
    %1094 = vmatmul.mubr.bf16.gmra.mrb[0].mxu0 %v85
    %v1095 = vpop.f32.mrb[0].mxu0
    %v1096 = vadd.f32 0.0, %v1095
    %v1097 = vpop.f32.mrb[0].mxu0
    %v1098 = vpop.f32.mrb[0].mxu0
    %v1099 = vadd.f32 0.0, %v1098
    %v1100 = vpop.f32.mrb[0].mxu0
    %1101 = vmatprep.mubr.bf16.mxu0 %v129
    %1102 = vmatmul.mubr.bf16.gmra.mrb[0].mxu0 %v86
    %v1103 = vpop.f32.mrb[0].mxu0
    %v1104 = vadd.f32 0.0, %v1103
    %v1105 = vpop.f32.mrb[0].mxu0
    %v1106 = vpop.f32.mrb[0].mxu0
    %v1107 = vadd.f32 0.0, %v1106
    %v1108 = vpop.f32.mrb[0].mxu0
    %1109 = vdwg.mxu0
    %1110 = vmatprep.subr.bf16.mxu0 0
    %1111 = vmatpush1.bf16.msra.mxu0 %v965
    %1112 = vmatprep.subr.bf16.mxu0 0
    %1113 = vmatpush1.bf16.msra.mxu0 %v966
    %1114 = vmatprep.subr.bf16.mxu0 0
    %1115 = vmatpush1.bf16.msra.mxu0 %v967
    %1116 = vmatprep.subr.bf16.mxu0 0
    %1117 = vmatpush1.bf16.msra.mxu0 %v968
    %1118 = vmatprep.subr.bf16.mxu0 0
    %1119 = vmatpush1.bf16.msra.mxu0 %v969
    %1120 = vmatprep.subr.bf16.mxu0 0
    %1121 = vmatpush1.bf16.msra.mxu0 %v970
    %1122 = vmatprep.subr.bf16.mxu0 0
    %1123 = vmatpush1.bf16.msra.mxu0 %v971
    %1124 = vmatprep.subr.bf16.mxu0 0
    %1125 = vmatpush1.bf16.msra.mxu0 %v972
    %1126 = vmatprep.subr.bf16.mxu0 0
    %1127 = vmatpush1.bf16.msra.mxu0 %v973
    %1128 = vmatprep.subr.bf16.mxu0 0
    %1129 = vmatpush1.bf16.msra.mxu0 %v974
    %1130 = vmatprep.subr.bf16.mxu0 0
    %1131 = vmatpush1.bf16.msra.mxu0 %v975
    %1132 = vmatprep.subr.bf16.mxu0 0
    %1133 = vmatpush1.bf16.msra.mxu0 %v976
    %1134 = vmatprep.subr.bf16.mxu0 0
    %1135 = vmatpush1.bf16.msra.mxu0 %v977
    %1136 = vmatprep.subr.bf16.mxu0 0
    %1137 = vmatpush1.bf16.msra.mxu0 %v978
    %1138 = vmatprep.subr.bf16.mxu0 0
    %1139 = vmatpush1.bf16.msra.mxu0 %v979
    %1140 = vmatprep.subr.bf16.mxu0 0
    %1141 = vmatpush1.bf16.msra.mxu0 %v980
    %1142 = vmatprep.mubr.bf16.mxu0 %v204
    %1143 = vmatmul.mubr.bf16.gmra.mrb[0].mxu0 %v163
    %v1144 = vpop.f32.mrb[0].mxu0
    %v1145 = vadd.f32 %v1048, %v1144
    %v1146 = vpop.f32.mrb[0].mxu0
    %v1147 = vpop.f32.mrb[0].mxu0
    %v1148 = vadd.f32 %v1051, %v1147
    %v1149 = vpop.f32.mrb[0].mxu0
    %1150 = vmatprep.mubr.bf16.mxu0 %v205
    %1151 = vmatmul.mubr.bf16.gmra.mrb[0].mxu0 %v164
    %v1152 = vpop.f32.mrb[0].mxu0
    %v1153 = vadd.f32 %v1056, %v1152
    %v1154 = vpop.f32.mrb[0].mxu0
    %v1155 = vpop.f32.mrb[0].mxu0
    %v1156 = vadd.f32 %v1059, %v1155
    %v1157 = vpop.f32.mrb[0].mxu0
    %1158 = vmatprep.mubr.bf16.mxu0 %v206
    %1159 = vmatmul.mubr.bf16.gmra.mrb[0].mxu0 %v165
    %v1160 = vpop.f32.mrb[0].mxu0
    %v1161 = vadd.f32 %v1064, %v1160
    %v1162 = vpop.f32.mrb[0].mxu0
    %v1163 = vpop.f32.mrb[0].mxu0
    %v1164 = vadd.f32 %v1067, %v1163
    %v1165 = vpop.f32.mrb[0].mxu0
    %1166 = vmatprep.mubr.bf16.mxu0 %v207
    %1167 = vmatmul.mubr.bf16.gmra.mrb[0].mxu0 %v166
    %v1168 = vpop.f32.mrb[0].mxu0
    %v1169 = vadd.f32 %v1072, %v1168
    %v1170 = vpop.f32.mrb[0].mxu0
    %v1171 = vpop.f32.mrb[0].mxu0
    %v1172 = vadd.f32 %v1075, %v1171
    %v1173 = vpop.f32.mrb[0].mxu0
    %1174 = vmatprep.mubr.bf16.mxu0 %v208
    %1175 = vmatmul.mubr.bf16.gmra.mrb[0].mxu0 %v167
    %v1176 = vpop.f32.mrb[0].mxu0
    %v1177 = vadd.f32 %v1080, %v1176
    %v1178 = vpop.f32.mrb[0].mxu0
    %v1179 = vpop.f32.mrb[0].mxu0
    %v1180 = vadd.f32 %v1083, %v1179
    %v1181 = vpop.f32.mrb[0].mxu0
    %1182 = vmatprep.mubr.bf16.mxu0 %v209
    %1183 = vmatmul.mubr.bf16.gmra.mrb[0].mxu0 %v168
    %v1184 = vpop.f32.mrb[0].mxu0
    %v1185 = vadd.f32 %v1088, %v1184
    %v1186 = vpop.f32.mrb[0].mxu0
    %v1187 = vpop.f32.mrb[0].mxu0
    %v1188 = vadd.f32 %v1091, %v1187
    %v1189 = vpop.f32.mrb[0].mxu0
    %1190 = vmatprep.mubr.bf16.mxu0 %v210
    %1191 = vmatmul.mubr.bf16.gmra.mrb[0].mxu0 %v169
    %v1192 = vpop.f32.mrb[0].mxu0
    %v1193 = vadd.f32 %v1096, %v1192
    %v1194 = vpop.f32.mrb[0].mxu0
    %v1195 = vpop.f32.mrb[0].mxu0
    %v1196 = vadd.f32 %v1099, %v1195
    %v1197 = vpop.f32.mrb[0].mxu0
    %1198 = vmatprep.mubr.bf16.mxu0 %v211
    %1199 = vmatmul.mubr.bf16.gmra.mrb[0].mxu0 %v170
    %v1200 = vpop.f32.mrb[0].mxu0
    %v1201 = vadd.f32 %v1104, %v1200
    %v1202 = vpop.f32.mrb[0].mxu0
    %v1203 = vpop.f32.mrb[0].mxu0
    %v1204 = vadd.f32 %v1107, %v1203
    %v1205 = vpop.f32.mrb[0].mxu0
    %1206 = vdwg.mxu0
    %v1207 = vld [vmem:[#allocation4] sm:$0x1]
    %v1209 = vlaneseq
    %v1210 = vshrl.u32 %v1209, 7
    %v1211 = vsub.s32 0, %v1210
    %v1212 = vrot.slane %v1207, %v1211
    %v1214 = vadd.f32 %v1145, %v1212
    %v1215 = vadd.f32 %v1148, %v1212
    %v1216 = vadd.f32 %v1153, %v1212
    %v1217 = vadd.f32 %v1156, %v1212
    %v1218 = vadd.f32 %v1161, %v1212
    %v1219 = vadd.f32 %v1164, %v1212
    %v1220 = vadd.f32 %v1169, %v1212
    %v1221 = vadd.f32 %v1172, %v1212
    %v1222 = vadd.f32 %v1177, %v1212
    %v1223 = vadd.f32 %v1180, %v1212
    %v1224 = vadd.f32 %v1185, %v1212
    %v1225 = vadd.f32 %v1188, %v1212
    %v1226 = vadd.f32 %v1193, %v1212
    %v1227 = vadd.f32 %v1196, %v1212
    %v1228 = vadd.f32 %v1201, %v1212
    %v1229 = vadd.f32 %v1204, %v1212
    %v1230 = vmax.f32 %v1214, 0.0
    %v1231 = vmax.f32 %v1215, 0.0
    %v1232 = vmax.f32 %v1216, 0.0
    %v1233 = vmax.f32 %v1217, 0.0
    %v1234 = vmax.f32 %v1218, 0.0
    %v1235 = vmax.f32 %v1219, 0.0
    %v1236 = vmax.f32 %v1220, 0.0
    %v1237 = vmax.f32 %v1221, 0.0
    %v1238 = vmax.f32 %v1222, 0.0
    %v1239 = vmax.f32 %v1223, 0.0
    %v1240 = vmax.f32 %v1224, 0.0
    %v1241 = vmax.f32 %v1225, 0.0
    %v1242 = vmax.f32 %v1226, 0.0
    %v1243 = vmax.f32 %v1227, 0.0
    %v1244 = vmax.f32 %v1228, 0.0
    %v1245 = vmax.f32 %v1229, 0.0
    %vm1246 = vcmp.lt.s32.totalorder %v104, 13
    %vm1247 = vcmp.lt.s32.totalorder %v678, 13
    %v1248 = vsel %vm1246, 1, 0
    %v1249 = vsel %vm1247, 1, 0
    %v1250 = vcvt.s32.f32 %v1248
    %v1251 = vcvt.s32.f32 %v1249
    %v1252 = vmul.f32 %v1230, %v1250
    %v1253 = vmul.f32 %v1231, %v1251
    %v1254 = vmul.f32 %v1232, %v1250
    %v1255 = vmul.f32 %v1233, %v1251
    %v1256 = vmul.f32 %v1234, %v1250
    %v1257 = vmul.f32 %v1235, %v1251
    %v1258 = vmul.f32 %v1236, %v1250
    %v1259 = vmul.f32 %v1237, %v1251
    %v1260 = vmul.f32 %v1238, %v1250
    %v1261 = vmul.f32 %v1239, %v1251
    %v1262 = vmul.f32 %v1240, %v1250
    %v1263 = vmul.f32 %v1241, %v1251
    %v1264 = vmul.f32 %v1242, %v1250
    %v1265 = vmul.f32 %v1243, %v1251
    %v1266 = vmul.f32 %v1244, %v1250
    %v1267 = vmul.f32 %v1245, %v1251
    %v1268 = vmax.f32 %v1252, %v1253
    %v1269 = vrot.slane %v1268, 4
    %v1270 = vmax.f32 %v1268, %v1269
    %v1271 = vrot.slane %v1270, 2
    %v1272 = vmax.f32 %v1270, %v1271
    %v1273 = vrot.slane %v1272, 1
    %v1274 = vmax.f32 %v1272, %v1273
    %v1275 = vmax.f32 %v1254, %v1255
    %v1276 = vrot.slane %v1275, 4
    %v1277 = vmax.f32 %v1275, %v1276
    %v1278 = vrot.slane %v1277, 2
    %v1279 = vmax.f32 %v1277, %v1278
    %v1280 = vrot.slane %v1279, 1
    %v1281 = vmax.f32 %v1279, %v1280
    %v1282 = vmax.f32 %v1256, %v1257
    %v1283 = vrot.slane %v1282, 4
    %v1284 = vmax.f32 %v1282, %v1283
    %v1285 = vrot.slane %v1284, 2
    %v1286 = vmax.f32 %v1284, %v1285
    %v1287 = vrot.slane %v1286, 1
    %v1288 = vmax.f32 %v1286, %v1287
    %v1289 = vmax.f32 %v1258, %v1259
    %v1290 = vrot.slane %v1289, 4
    %v1291 = vmax.f32 %v1289, %v1290
    %v1292 = vrot.slane %v1291, 2
    %v1293 = vmax.f32 %v1291, %v1292
    %v1294 = vrot.slane %v1293, 1
    %v1295 = vmax.f32 %v1293, %v1294
    %v1296 = vmax.f32 %v1260, %v1261
    %v1297 = vrot.slane %v1296, 4
    %v1298 = vmax.f32 %v1296, %v1297
    %v1299 = vrot.slane %v1298, 2
    %v1300 = vmax.f32 %v1298, %v1299
    %v1301 = vrot.slane %v1300, 1
    %v1302 = vmax.f32 %v1300, %v1301
    %v1303 = vmax.f32 %v1262, %v1263
    %v1304 = vrot.slane %v1303, 4
    %v1305 = vmax.f32 %v1303, %v1304
    %v1306 = vrot.slane %v1305, 2
    %v1307 = vmax.f32 %v1305, %v1306
    %v1308 = vrot.slane %v1307, 1
    %v1309 = vmax.f32 %v1307, %v1308
    %v1310 = vmax.f32 %v1264, %v1265
    %v1311 = vrot.slane %v1310, 4
    %v1312 = vmax.f32 %v1310, %v1311
    %v1313 = vrot.slane %v1312, 2
    %v1314 = vmax.f32 %v1312, %v1313
    %v1315 = vrot.slane %v1314, 1
    %v1316 = vmax.f32 %v1314, %v1315
    %v1317 = vmax.f32 %v1266, %v1267
    %v1318 = vrot.slane %v1317, 4
    %v1319 = vmax.f32 %v1317, %v1318
    %v1320 = vrot.slane %v1319, 2
    %v1321 = vmax.f32 %v1319, %v1320
    %v1322 = vrot.slane %v1321, 1
    %v1323 = vmax.f32 %v1321, %v1322
    %v1324 = vld [vmem:[%s3] sm:$0xf]
    %v1325 = vld [vmem:[%s3 + $0x4] sm:$0xf]
    %v1326 = vld [vmem:[%s3 + $0x8] sm:$0xf]
    %v1327 = vld [vmem:[%s3 + $0xc] sm:$0xf]
    %v1328 = vld [vmem:[%s3 + $0x10] sm:$0xf]
    %v1329 = vld [vmem:[%s3 + $0x14] sm:$0xf]
    %v1330 = vld [vmem:[%s3 + $0x18] sm:$0xf]
    %v1331 = vld [vmem:[%s3 + $0x1c] sm:$0xf]
    %v1332 = vld [vmem:[%s3 + $0x20] sm:$0xf]
    %v1333 = vld [vmem:[%s3 + $0x24] sm:$0xf]
    %v1334 = vld [vmem:[%s3 + $0x28] sm:$0xf]
    %v1335 = vld [vmem:[%s3 + $0x2c] sm:$0xf]
    %v1336 = vld [vmem:[%s3 + $0x30] sm:$0xf]
    %v1337 = vld [vmem:[%s3 + $0x34] sm:$0xf]
    %v1338 = vld [vmem:[%s3 + $0x38] sm:$0xf]
    %v1339 = vld [vmem:[%s3 + $0x3c] sm:$0xf]
    %v1340 = vld [vmem:[%s3 + $0x40] sm:$0xf]
    %v1341 = vld [vmem:[%s3 + $0x44] sm:$0xf]
    %v1342 = vld [vmem:[%s3 + $0x48] sm:$0xf]
    %v1343 = vld [vmem:[%s3 + $0x4c] sm:$0xf]
    %v1344 = vld [vmem:[%s3 + $0x50] sm:$0xf]
    %v1345 = vld [vmem:[%s3 + $0x54] sm:$0xf]
    %v1346 = vld [vmem:[%s3 + $0x58] sm:$0xf]
    %v1347 = vld [vmem:[%s3 + $0x5c] sm:$0xf]
    %v1348 = vld [vmem:[%s3 + $0x60] sm:$0xf]
    %v1349 = vld [vmem:[%s3 + $0x64] sm:$0xf]
    %v1350 = vld [vmem:[%s3 + $0x68] sm:$0xf]
    %v1351 = vld [vmem:[%s3 + $0x6c] sm:$0xf]
    %v1352 = vld [vmem:[%s3 + $0x70] sm:$0xf]
    %v1353 = vld [vmem:[%s3 + $0x74] sm:$0xf]
    %v1354 = vld [vmem:[%s3 + $0x78] sm:$0xf]
    %v1355 = vld [vmem:[%s3 + $0x7c] sm:$0xf]
    %v1356 = vld [vmem:[%s3 + $0x80] sm:$0xf]
    %v1357 = vld [vmem:[%s3 + $0x84] sm:$0xf]
    %v1358 = vld [vmem:[%s3 + $0x88] sm:$0xf]
    %v1359 = vld [vmem:[%s3 + $0x8c] sm:$0xf]
    %v1360 = vld [vmem:[%s3 + $0x90] sm:$0xf]
    %v1361 = vld [vmem:[%s3 + $0x94] sm:$0xf]
    %v1362 = vld [vmem:[%s3 + $0x98] sm:$0xf]
    %v1363 = vld [vmem:[%s3 + $0x9c] sm:$0xf]
    %v1364 = vld [vmem:[%s3 + $0xa0] sm:$0xf]
    %v1365 = vld [vmem:[%s3 + $0xa4] sm:$0xf]
    %v1366 = vld [vmem:[%s3 + $0xa8] sm:$0xf]
    %v1367 = vld [vmem:[%s3 + $0xac] sm:$0xf]
    %v1368 = vld [vmem:[%s3 + $0xb0] sm:$0xf]
    %v1369 = vld [vmem:[%s3 + $0xb4] sm:$0xf]
    %v1370 = vld [vmem:[%s3 + $0xb8] sm:$0xf]
    %v1371 = vld [vmem:[%s3 + $0xbc] sm:$0xf]
    %v1372 = vld [vmem:[%s3 + $0xc0] sm:$0xf]
    %v1373 = vld [vmem:[%s3 + $0xc4] sm:$0xf]
    %v1374 = vld [vmem:[%s3 + $0xc8] sm:$0xf]
    %v1375 = vld [vmem:[%s3 + $0xcc] sm:$0xf]
    %v1376 = vld [vmem:[%s3 + $0xd0] sm:$0xf]
    %v1377 = vld [vmem:[%s3 + $0xd4] sm:$0xf]
    %v1378 = vld [vmem:[%s3 + $0xd8] sm:$0xf]
    %v1379 = vld [vmem:[%s3 + $0xdc] sm:$0xf]
    %v1380 = vld [vmem:[%s3 + $0xe0] sm:$0xf]
    %v1381 = vld [vmem:[%s3 + $0xe4] sm:$0xf]
    %v1382 = vld [vmem:[%s3 + $0xe8] sm:$0xf]
    %v1383 = vld [vmem:[%s3 + $0xec] sm:$0xf]
    %v1384 = vld [vmem:[%s3 + $0xf0] sm:$0xf]
    %v1385 = vld [vmem:[%s3 + $0xf4] sm:$0xf]
    %v1386 = vld [vmem:[%s3 + $0xf8] sm:$0xf]
    %v1387 = vld [vmem:[%s3 + $0xfc] sm:$0xf]
    %v1388 = vld [vmem:[%s3 + $0x100] sm:$0xf]
    %v1389 = vld [vmem:[%s3 + $0x104] sm:$0xf]
    %v1390 = vld [vmem:[%s3 + $0x108] sm:$0xf]
    %v1391 = vld [vmem:[%s3 + $0x10c] sm:$0xf]
    %v1392 = vld [vmem:[%s3 + $0x110] sm:$0xf]
    %v1393 = vld [vmem:[%s3 + $0x114] sm:$0xf]
    %v1394 = vld [vmem:[%s3 + $0x118] sm:$0xf]
    %v1395 = vld [vmem:[%s3 + $0x11c] sm:$0xf]
    %v1396 = vld [vmem:[%s3 + $0x120] sm:$0xf]
    %v1397 = vld [vmem:[%s3 + $0x124] sm:$0xf]
    %v1398 = vld [vmem:[%s3 + $0x128] sm:$0xf]
    %v1399 = vld [vmem:[%s3 + $0x12c] sm:$0xf]
    %v1400 = vld [vmem:[%s3 + $0x130] sm:$0xf]
    %v1401 = vld [vmem:[%s3 + $0x134] sm:$0xf]
    %v1402 = vld [vmem:[%s3 + $0x138] sm:$0xf]
    %v1403 = vld [vmem:[%s3 + $0x13c] sm:$0xf]
    %v1484 = vunpack.c.l.b16 %v1324
    %v1485 = vunpack.c.l.b16 %v1325
    %v1486 = vunpack.c.l.b16 %v1326
    %v1487 = vunpack.c.l.b16 %v1327
    %v1488 = vunpack.c.l.b16 %v1328
    %v1489 = vunpack.c.l.b16 %v1329
    %v1490 = vunpack.c.l.b16 %v1330
    %v1491 = vunpack.c.l.b16 %v1331
    %v1492 = vunpack.c.l.b16 %v1332
    %v1493 = vunpack.c.l.b16 %v1333
    %v1494 = vunpack.c.l.b16 %v1334
    %v1495 = vunpack.c.l.b16 %v1335
    %v1496 = vunpack.c.l.b16 %v1336
    %v1497 = vunpack.c.l.b16 %v1337
    %v1498 = vunpack.c.l.b16 %v1338
    %v1499 = vunpack.c.l.b16 %v1339
    %v1500 = vunpack.c.l.b16 %v1340
    %v1501 = vunpack.c.l.b16 %v1341
    %v1502 = vunpack.c.l.b16 %v1342
    %v1503 = vunpack.c.l.b16 %v1343
    %v1504 = vunpack.c.l.b16 %v1344
    %v1505 = vunpack.c.l.b16 %v1345
    %v1506 = vunpack.c.l.b16 %v1346
    %v1507 = vunpack.c.l.b16 %v1347
    %v1508 = vunpack.c.l.b16 %v1348
    %v1509 = vunpack.c.l.b16 %v1349
    %v1510 = vunpack.c.l.b16 %v1350
    %v1511 = vunpack.c.l.b16 %v1351
    %v1512 = vunpack.c.l.b16 %v1352
    %v1513 = vunpack.c.l.b16 %v1353
    %v1514 = vunpack.c.l.b16 %v1354
    %v1515 = vunpack.c.l.b16 %v1355
    %v1516 = vunpack.c.l.b16 %v1356
    %v1517 = vunpack.c.l.b16 %v1357
    %v1518 = vunpack.c.l.b16 %v1358
    %v1519 = vunpack.c.l.b16 %v1359
    %v1520 = vunpack.c.l.b16 %v1360
    %v1521 = vunpack.c.l.b16 %v1361
    %v1522 = vunpack.c.l.b16 %v1362
    %v1523 = vunpack.c.l.b16 %v1363
    %v1524 = vunpack.c.l.b16 %v1364
    %v1525 = vunpack.c.l.b16 %v1365
    %v1526 = vunpack.c.l.b16 %v1366
    %v1527 = vunpack.c.l.b16 %v1367
    %v1528 = vunpack.c.l.b16 %v1368
    %v1529 = vunpack.c.l.b16 %v1369
    %v1530 = vunpack.c.l.b16 %v1370
    %v1531 = vunpack.c.l.b16 %v1371
    %v1532 = vunpack.c.l.b16 %v1372
    %v1533 = vunpack.c.l.b16 %v1373
    %v1534 = vunpack.c.l.b16 %v1374
    %v1535 = vunpack.c.l.b16 %v1375
    %v1536 = vunpack.c.l.b16 %v1376
    %v1537 = vunpack.c.l.b16 %v1377
    %v1538 = vunpack.c.l.b16 %v1378
    %v1539 = vunpack.c.l.b16 %v1379
    %v1540 = vunpack.c.l.b16 %v1380
    %v1541 = vunpack.c.l.b16 %v1381
    %v1542 = vunpack.c.l.b16 %v1382
    %v1543 = vunpack.c.l.b16 %v1383
    %v1544 = vunpack.c.l.b16 %v1384
    %v1545 = vunpack.c.l.b16 %v1385
    %v1546 = vunpack.c.l.b16 %v1386
    %v1547 = vunpack.c.l.b16 %v1387
    %v1548 = vunpack.c.l.b16 %v1388
    %v1549 = vunpack.c.l.b16 %v1389
    %v1550 = vunpack.c.l.b16 %v1390
    %v1551 = vunpack.c.l.b16 %v1391
    %v1552 = vunpack.c.l.b16 %v1392
    %v1553 = vunpack.c.l.b16 %v1393
    %v1554 = vunpack.c.l.b16 %v1394
    %v1555 = vunpack.c.l.b16 %v1395
    %v1556 = vunpack.c.l.b16 %v1396
    %v1557 = vunpack.c.l.b16 %v1397
    %v1558 = vunpack.c.l.b16 %v1398
    %v1559 = vunpack.c.l.b16 %v1399
    %v1560 = vunpack.c.l.b16 %v1400
    %v1561 = vunpack.c.l.b16 %v1401
    %v1562 = vunpack.c.l.b16 %v1402
    %v1563 = vunpack.c.l.b16 %v1403
    %v1564 = vpack.c.b16 %v1485, %v1484
    %v1565 = vpack.c.b16 %v1487, %v1486
    %v1566 = vpack.c.b16 %v1489, %v1488
    %v1567 = vpack.c.b16 %v1491, %v1490
    %v1568 = vpack.c.b16 %v1493, %v1492
    %v1569 = vpack.c.b16 %v1495, %v1494
    %v1570 = vpack.c.b16 %v1497, %v1496
    %v1571 = vpack.c.b16 %v1499, %v1498
    %v1572 = vpack.c.b16 %v1501, %v1500
    %v1573 = vpack.c.b16 %v1503, %v1502
    %v1574 = vpack.c.b16 %v1505, %v1504
    %v1575 = vpack.c.b16 %v1507, %v1506
    %v1576 = vpack.c.b16 %v1509, %v1508
    %v1577 = vpack.c.b16 %v1511, %v1510
    %v1578 = vpack.c.b16 %v1513, %v1512
    %v1579 = vpack.c.b16 %v1515, %v1514
    %v1580 = vpack.c.b16 %v1517, %v1516
    %v1581 = vpack.c.b16 %v1519, %v1518
    %v1582 = vpack.c.b16 %v1521, %v1520
    %v1583 = vpack.c.b16 %v1523, %v1522
    %v1584 = vpack.c.b16 %v1525, %v1524
    %v1585 = vpack.c.b16 %v1527, %v1526
    %v1586 = vpack.c.b16 %v1529, %v1528
    %v1587 = vpack.c.b16 %v1531, %v1530
    %v1588 = vpack.c.b16 %v1533, %v1532
    %v1589 = vpack.c.b16 %v1535, %v1534
    %v1590 = vpack.c.b16 %v1537, %v1536
    %v1591 = vpack.c.b16 %v1539, %v1538
    %v1592 = vpack.c.b16 %v1541, %v1540
    %v1593 = vpack.c.b16 %v1543, %v1542
    %v1594 = vpack.c.b16 %v1545, %v1544
    %v1595 = vpack.c.b16 %v1547, %v1546
    %v1596 = vpack.c.b16 %v1549, %v1548
    %v1597 = vpack.c.b16 %v1551, %v1550
    %v1598 = vpack.c.b16 %v1553, %v1552
    %v1599 = vpack.c.b16 %v1555, %v1554
    %v1600 = vpack.c.b16 %v1557, %v1556
    %v1601 = vpack.c.b16 %v1559, %v1558
    %v1602 = vpack.c.b16 %v1561, %v1560
    %v1603 = vpack.c.b16 %v1563, %v1562
    %1644 = vmatprep.subr.bf16.mxu0 0
    %1645 = vmatpush1.bf16.msra.mxu0 %v1564
    %1646 = vmatprep.subr.bf16.mxu0 0
    %1647 = vmatpush1.bf16.msra.mxu0 %v1565
    %1648 = vmatprep.subr.bf16.mxu0 0
    %1649 = vmatpush1.bf16.msra.mxu0 %v1566
    %1650 = vmatprep.subr.bf16.mxu0 0
    %1651 = vmatpush1.bf16.msra.mxu0 %v1567
    %1652 = vmatprep.subr.bf16.mxu0 0
    %1653 = vmatpush1.bf16.msra.mxu0 %v1568
    %1654 = vmatprep.subr.bf16.mxu0 0
    %1655 = vmatpush1.bf16.msra.mxu0 %v1569
    %1656 = vmatprep.subr.bf16.mxu0 0
    %1657 = vmatpush1.bf16.msra.mxu0 %v1570
    %1658 = vmatprep.subr.bf16.mxu0 0
    %1659 = vmatpush1.bf16.msra.mxu0 %v1571
    %1660 = vmatprep.subr.bf16.mxu0 0
    %1661 = vmatpush1.bf16.msra.mxu0 %v1572
    %1662 = vmatprep.subr.bf16.mxu0 0
    %1663 = vmatpush1.bf16.msra.mxu0 %v1573
    %1664 = vmatprep.subr.bf16.mxu0 0
    %1665 = vmatpush1.bf16.msra.mxu0 %v1574
    %1666 = vmatprep.subr.bf16.mxu0 0
    %1667 = vmatpush1.bf16.msra.mxu0 %v1575
    %1668 = vmatprep.subr.bf16.mxu0 0
    %1669 = vmatpush1.bf16.msra.mxu0 %v1576
    %1670 = vmatprep.subr.bf16.mxu0 0
    %1671 = vmatpush1.bf16.msra.mxu0 %v1577
    %1672 = vmatprep.subr.bf16.mxu0 0
    %1673 = vmatpush1.bf16.msra.mxu0 %v1578
    %1674 = vmatprep.subr.bf16.mxu0 0
    %1675 = vmatpush1.bf16.msra.mxu0 %v1579
    %1676 = vmatprep.mubr.bf16.mxu0 %v122
    %1677 = vmatmul.mubr.bf16.gmra.mrb[0].mxu0 %v79
    %v1678 = vpop.f32.mrb[0].mxu0
    %v1679 = vadd.f32 0.0, %v1678
    %v1680 = vpop.f32.mrb[0].mxu0
    %v1681 = vpop.f32.mrb[0].mxu0
    %v1682 = vadd.f32 0.0, %v1681
    %v1683 = vpop.f32.mrb[0].mxu0
    %1684 = vmatprep.mubr.bf16.mxu0 %v123
    %1685 = vmatmul.mubr.bf16.gmra.mrb[0].mxu0 %v80
    %v1686 = vpop.f32.mrb[0].mxu0
    %v1687 = vadd.f32 0.0, %v1686
    %v1688 = vpop.f32.mrb[0].mxu0
    %v1689 = vpop.f32.mrb[0].mxu0
    %v1690 = vadd.f32 0.0, %v1689
    %v1691 = vpop.f32.mrb[0].mxu0
    %1692 = vmatprep.mubr.bf16.mxu0 %v124
    %1693 = vmatmul.mubr.bf16.gmra.mrb[0].mxu0 %v81
    %v1694 = vpop.f32.mrb[0].mxu0
    %v1695 = vadd.f32 0.0, %v1694
    %v1696 = vpop.f32.mrb[0].mxu0
    %v1697 = vpop.f32.mrb[0].mxu0
    %v1698 = vadd.f32 0.0, %v1697
    %v1699 = vpop.f32.mrb[0].mxu0
    %1700 = vmatprep.mubr.bf16.mxu0 %v125
    %1701 = vmatmul.mubr.bf16.gmra.mrb[0].mxu0 %v82
    %v1702 = vpop.f32.mrb[0].mxu0
    %v1703 = vadd.f32 0.0, %v1702
    %v1704 = vpop.f32.mrb[0].mxu0
    %v1705 = vpop.f32.mrb[0].mxu0
    %v1706 = vadd.f32 0.0, %v1705
    %v1707 = vpop.f32.mrb[0].mxu0
    %1708 = vmatprep.mubr.bf16.mxu0 %v126
    %1709 = vmatmul.mubr.bf16.gmra.mrb[0].mxu0 %v83
    %v1710 = vpop.f32.mrb[0].mxu0
    %v1711 = vadd.f32 0.0, %v1710
    %v1712 = vpop.f32.mrb[0].mxu0
    %v1713 = vpop.f32.mrb[0].mxu0
    %v1714 = vadd.f32 0.0, %v1713
    %v1715 = vpop.f32.mrb[0].mxu0
    %1716 = vmatprep.mubr.bf16.mxu0 %v127
    %1717 = vmatmul.mubr.bf16.gmra.mrb[0].mxu0 %v84
    %v1718 = vpop.f32.mrb[0].mxu0
    %v1719 = vadd.f32 0.0, %v1718
    %v1720 = vpop.f32.mrb[0].mxu0
    %v1721 = vpop.f32.mrb[0].mxu0
    %v1722 = vadd.f32 0.0, %v1721
    %v1723 = vpop.f32.mrb[0].mxu0
    %1724 = vmatprep.mubr.bf16.mxu0 %v128
    %1725 = vmatmul.mubr.bf16.gmra.mrb[0].mxu0 %v85
    %v1726 = vpop.f32.mrb[0].mxu0
    %v1727 = vadd.f32 0.0, %v1726
    %v1728 = vpop.f32.mrb[0].mxu0
    %v1729 = vpop.f32.mrb[0].mxu0
    %v1730 = vadd.f32 0.0, %v1729
    %v1731 = vpop.f32.mrb[0].mxu0
    %1732 = vmatprep.mubr.bf16.mxu0 %v129
    %1733 = vmatmul.mubr.bf16.gmra.mrb[0].mxu0 %v86
    %v1734 = vpop.f32.mrb[0].mxu0
    %v1735 = vadd.f32 0.0, %v1734
    %v1736 = vpop.f32.mrb[0].mxu0
    %v1737 = vpop.f32.mrb[0].mxu0
    %v1738 = vadd.f32 0.0, %v1737
    %v1739 = vpop.f32.mrb[0].mxu0
    %1740 = vdwg.mxu0
    %1741 = vmatprep.subr.bf16.mxu0 0
    %1742 = vmatpush1.bf16.msra.mxu0 %v1580
    %1743 = vmatprep.subr.bf16.mxu0 0
    %1744 = vmatpush1.bf16.msra.mxu0 %v1581
    %1745 = vmatprep.subr.bf16.mxu0 0
    %1746 = vmatpush1.bf16.msra.mxu0 %v1582
    %1747 = vmatprep.subr.bf16.mxu0 0
    %1748 = vmatpush1.bf16.msra.mxu0 %v1583
    %1749 = vmatprep.subr.bf16.mxu0 0
    %1750 = vmatpush1.bf16.msra.mxu0 %v1584
    %1751 = vmatprep.subr.bf16.mxu0 0
    %1752 = vmatpush1.bf16.msra.mxu0 %v1585
    %1753 = vmatprep.subr.bf16.mxu0 0
    %1754 = vmatpush1.bf16.msra.mxu0 %v1586
    %1755 = vmatprep.subr.bf16.mxu0 0
    %1756 = vmatpush1.bf16.msra.mxu0 %v1587
    %1757 = vmatprep.subr.bf16.mxu0 0
    %1758 = vmatpush1.bf16.msra.mxu0 %v1588
    %1759 = vmatprep.subr.bf16.mxu0 0
    %1760 = vmatpush1.bf16.msra.mxu0 %v1589
    %1761 = vmatprep.subr.bf16.mxu0 0
    %1762 = vmatpush1.bf16.msra.mxu0 %v1590
    %1763 = vmatprep.subr.bf16.mxu0 0
    %1764 = vmatpush1.bf16.msra.mxu0 %v1591
    %1765 = vmatprep.subr.bf16.mxu0 0
    %1766 = vmatpush1.bf16.msra.mxu0 %v1592
    %1767 = vmatprep.subr.bf16.mxu0 0
    %1768 = vmatpush1.bf16.msra.mxu0 %v1593
    %1769 = vmatprep.subr.bf16.mxu0 0
    %1770 = vmatpush1.bf16.msra.mxu0 %v1594
    %1771 = vmatprep.subr.bf16.mxu0 0
    %1772 = vmatpush1.bf16.msra.mxu0 %v1595
    %1773 = vmatprep.mubr.bf16.mxu0 %v204
    %1774 = vmatmul.mubr.bf16.gmra.mrb[0].mxu0 %v163
    %v1775 = vpop.f32.mrb[0].mxu0
    %v1776 = vadd.f32 %v1679, %v1775
    %v1777 = vpop.f32.mrb[0].mxu0
    %v1778 = vpop.f32.mrb[0].mxu0
    %v1779 = vadd.f32 %v1682, %v1778
    %v1780 = vpop.f32.mrb[0].mxu0
    %1781 = vmatprep.mubr.bf16.mxu0 %v205
    %1782 = vmatmul.mubr.bf16.gmra.mrb[0].mxu0 %v164
    %v1783 = vpop.f32.mrb[0].mxu0
    %v1784 = vadd.f32 %v1687, %v1783
    %v1785 = vpop.f32.mrb[0].mxu0
    %v1786 = vpop.f32.mrb[0].mxu0
    %v1787 = vadd.f32 %v1690, %v1786
    %v1788 = vpop.f32.mrb[0].mxu0
    %1789 = vmatprep.mubr.bf16.mxu0 %v206
    %1790 = vmatmul.mubr.bf16.gmra.mrb[0].mxu0 %v165
    %v1791 = vpop.f32.mrb[0].mxu0
    %v1792 = vadd.f32 %v1695, %v1791
    %v1793 = vpop.f32.mrb[0].mxu0
    %v1794 = vpop.f32.mrb[0].mxu0
    %v1795 = vadd.f32 %v1698, %v1794
    %v1796 = vpop.f32.mrb[0].mxu0
    %1797 = vmatprep.mubr.bf16.mxu0 %v207
    %1798 = vmatmul.mubr.bf16.gmra.mrb[0].mxu0 %v166
    %v1799 = vpop.f32.mrb[0].mxu0
    %v1800 = vadd.f32 %v1703, %v1799
    %v1801 = vpop.f32.mrb[0].mxu0
    %v1802 = vpop.f32.mrb[0].mxu0
    %v1803 = vadd.f32 %v1706, %v1802
    %v1804 = vpop.f32.mrb[0].mxu0
    %1805 = vmatprep.mubr.bf16.mxu0 %v208
    %1806 = vmatmul.mubr.bf16.gmra.mrb[0].mxu0 %v167
    %v1807 = vpop.f32.mrb[0].mxu0
    %v1808 = vadd.f32 %v1711, %v1807
    %v1809 = vpop.f32.mrb[0].mxu0
    %v1810 = vpop.f32.mrb[0].mxu0
    %v1811 = vadd.f32 %v1714, %v1810
    %v1812 = vpop.f32.mrb[0].mxu0
    %1813 = vmatprep.mubr.bf16.mxu0 %v209
    %1814 = vmatmul.mubr.bf16.gmra.mrb[0].mxu0 %v168
    %v1815 = vpop.f32.mrb[0].mxu0
    %v1816 = vadd.f32 %v1719, %v1815
    %v1817 = vpop.f32.mrb[0].mxu0
    %v1818 = vpop.f32.mrb[0].mxu0
    %v1819 = vadd.f32 %v1722, %v1818
    %v1820 = vpop.f32.mrb[0].mxu0
    %1821 = vmatprep.mubr.bf16.mxu0 %v210
    %1822 = vmatmul.mubr.bf16.gmra.mrb[0].mxu0 %v169
    %v1823 = vpop.f32.mrb[0].mxu0
    %v1824 = vadd.f32 %v1727, %v1823
    %v1825 = vpop.f32.mrb[0].mxu0
    %v1826 = vpop.f32.mrb[0].mxu0
    %v1827 = vadd.f32 %v1730, %v1826
    %v1828 = vpop.f32.mrb[0].mxu0
    %1829 = vmatprep.mubr.bf16.mxu0 %v211
    %1830 = vmatmul.mubr.bf16.gmra.mrb[0].mxu0 %v170
    %v1831 = vpop.f32.mrb[0].mxu0
    %v1832 = vadd.f32 %v1735, %v1831
    %v1833 = vpop.f32.mrb[0].mxu0
    %v1834 = vpop.f32.mrb[0].mxu0
    %v1835 = vadd.f32 %v1738, %v1834
    %v1836 = vpop.f32.mrb[0].mxu0
    %1837 = vdwg.mxu0
    %1838 = vmatprep.subr.bf16.mxu0 0
    %1839 = vmatpush1.bf16.msra.mxu0 %v1596
    %1840 = vmatprep.subr.bf16.mxu0 0
    %1841 = vmatpush1.bf16.msra.mxu0 %v1597
    %1842 = vmatprep.subr.bf16.mxu0 0
    %1843 = vmatpush1.bf16.msra.mxu0 %v1598
    %1844 = vmatprep.subr.bf16.mxu0 0
    %1845 = vmatpush1.bf16.msra.mxu0 %v1599
    %1846 = vmatprep.subr.bf16.mxu0 0
    %1847 = vmatpush1.bf16.msra.mxu0 %v1600
    %1848 = vmatprep.subr.bf16.mxu0 0
    %1849 = vmatpush1.bf16.msra.mxu0 %v1601
    %1850 = vmatprep.subr.bf16.mxu0 0
    %1851 = vmatpush1.bf16.msra.mxu0 %v1602
    %1852 = vmatprep.subr.bf16.mxu0 0
    %1853 = vmatpush1.bf16.msra.mxu0 %v1603
    %1854 = vmatprep.subr.bf16.mxu0 0
    %1855 = vmatpush1.bf16.msra.mxu0 0
    %1856 = vmatprep.subr.bf16.mxu0 0
    %1857 = vmatpush1.bf16.msra.mxu0 0
    %1858 = vmatprep.subr.bf16.mxu0 0
    %1859 = vmatpush1.bf16.msra.mxu0 0
    %1860 = vmatprep.subr.bf16.mxu0 0
    %1861 = vmatpush1.bf16.msra.mxu0 0
    %1862 = vmatprep.subr.bf16.mxu0 0
    %1863 = vmatpush1.bf16.msra.mxu0 0
    %1864 = vmatprep.subr.bf16.mxu0 0
    %1865 = vmatpush1.bf16.msra.mxu0 0
    %1866 = vmatprep.subr.bf16.mxu0 0
    %1867 = vmatpush1.bf16.msra.mxu0 0
    %1868 = vmatprep.subr.bf16.mxu0 0
    %1869 = vmatpush1.bf16.msra.mxu0 0
    %1870 = vmatprep.mubr.bf16.mxu0 0
    %1871 = vmatmul.mubr.bf16.gmra.mrb[0].mxu0 %v245
    %v1872 = vpop.f32.mrb[0].mxu0
    %v1873 = vadd.f32 %v1776, %v1872
    %v1874 = vpop.f32.mrb[0].mxu0
    %v1875 = vpop.f32.mrb[0].mxu0
    %v1876 = vadd.f32 %v1779, %v1875
    %v1877 = vpop.f32.mrb[0].mxu0
    %1878 = vmatprep.mubr.bf16.mxu0 0
    %1879 = vmatmul.mubr.bf16.gmra.mrb[0].mxu0 %v246
    %v1880 = vpop.f32.mrb[0].mxu0
    %v1881 = vadd.f32 %v1784, %v1880
    %v1882 = vpop.f32.mrb[0].mxu0
    %v1883 = vpop.f32.mrb[0].mxu0
    %v1884 = vadd.f32 %v1787, %v1883
    %v1885 = vpop.f32.mrb[0].mxu0
    %1886 = vmatprep.mubr.bf16.mxu0 0
    %1887 = vmatmul.mubr.bf16.gmra.mrb[0].mxu0 %v247
    %v1888 = vpop.f32.mrb[0].mxu0
    %v1889 = vadd.f32 %v1792, %v1888
    %v1890 = vpop.f32.mrb[0].mxu0
    %v1891 = vpop.f32.mrb[0].mxu0
    %v1892 = vadd.f32 %v1795, %v1891
    %v1893 = vpop.f32.mrb[0].mxu0
    %1894 = vmatprep.mubr.bf16.mxu0 0
    %1895 = vmatmul.mubr.bf16.gmra.mrb[0].mxu0 %v248
    %v1896 = vpop.f32.mrb[0].mxu0
    %v1897 = vadd.f32 %v1800, %v1896
    %v1898 = vpop.f32.mrb[0].mxu0
    %v1899 = vpop.f32.mrb[0].mxu0
    %v1900 = vadd.f32 %v1803, %v1899
    %v1901 = vpop.f32.mrb[0].mxu0
    %1902 = vmatprep.mubr.bf16.mxu0 0
    %1903 = vmatmul.mubr.bf16.gmra.mrb[0].mxu0 %v249
    %v1904 = vpop.f32.mrb[0].mxu0
    %v1905 = vadd.f32 %v1808, %v1904
    %v1906 = vpop.f32.mrb[0].mxu0
    %v1907 = vpop.f32.mrb[0].mxu0
    %v1908 = vadd.f32 %v1811, %v1907
    %v1909 = vpop.f32.mrb[0].mxu0
    %1910 = vmatprep.mubr.bf16.mxu0 0
    %1911 = vmatmul.mubr.bf16.gmra.mrb[0].mxu0 %v250
    %v1912 = vpop.f32.mrb[0].mxu0
    %v1913 = vadd.f32 %v1816, %v1912
    %v1914 = vpop.f32.mrb[0].mxu0
    %v1915 = vpop.f32.mrb[0].mxu0
    %v1916 = vadd.f32 %v1819, %v1915
    %v1917 = vpop.f32.mrb[0].mxu0
    %1918 = vmatprep.mubr.bf16.mxu0 0
    %1919 = vmatmul.mubr.bf16.gmra.mrb[0].mxu0 %v251
    %v1920 = vpop.f32.mrb[0].mxu0
    %v1921 = vadd.f32 %v1824, %v1920
    %v1922 = vpop.f32.mrb[0].mxu0
    %v1923 = vpop.f32.mrb[0].mxu0
    %v1924 = vadd.f32 %v1827, %v1923
    %v1925 = vpop.f32.mrb[0].mxu0
    %1926 = vmatprep.mubr.bf16.mxu0 0
    %1927 = vmatmul.mubr.bf16.gmra.mrb[0].mxu0 %v252
    %v1928 = vpop.f32.mrb[0].mxu0
    %v1929 = vadd.f32 %v1832, %v1928
    %v1930 = vpop.f32.mrb[0].mxu0
    %v1931 = vpop.f32.mrb[0].mxu0
    %v1932 = vadd.f32 %v1835, %v1931
    %v1933 = vpop.f32.mrb[0].mxu0
    %1934 = vdwg.mxu0
    %v1935 = vld [vmem:[%s6] sm:$0x1]
    %v1937 = vlaneseq
    %v1938 = vshrl.u32 %v1937, 7
    %v1939 = vsub.s32 0, %v1938
    %v1940 = vrot.slane %v1935, %v1939
    %v1942 = vadd.f32 %v1873, %v1940
    %v1943 = vadd.f32 %v1876, %v1940
    %v1944 = vadd.f32 %v1881, %v1940
    %v1945 = vadd.f32 %v1884, %v1940
    %v1946 = vadd.f32 %v1889, %v1940
    %v1947 = vadd.f32 %v1892, %v1940
    %v1948 = vadd.f32 %v1897, %v1940
    %v1949 = vadd.f32 %v1900, %v1940
    %v1950 = vadd.f32 %v1905, %v1940
    %v1951 = vadd.f32 %v1908, %v1940
    %v1952 = vadd.f32 %v1913, %v1940
    %v1953 = vadd.f32 %v1916, %v1940
    %v1954 = vadd.f32 %v1921, %v1940
    %v1955 = vadd.f32 %v1924, %v1940
    %v1956 = vadd.f32 %v1929, %v1940
    %v1957 = vadd.f32 %v1932, %v1940
    %v1958 = vmax.f32 %v1942, 0.0
    %v1959 = vmax.f32 %v1943, 0.0
    %v1960 = vmax.f32 %v1944, 0.0
    %v1961 = vmax.f32 %v1945, 0.0
    %v1962 = vmax.f32 %v1946, 0.0
    %v1963 = vmax.f32 %v1947, 0.0
    %v1964 = vmax.f32 %v1948, 0.0
    %v1965 = vmax.f32 %v1949, 0.0
    %v1966 = vmax.f32 %v1950, 0.0
    %v1967 = vmax.f32 %v1951, 0.0
    %v1968 = vmax.f32 %v1952, 0.0
    %v1969 = vmax.f32 %v1953, 0.0
    %v1970 = vmax.f32 %v1954, 0.0
    %v1971 = vmax.f32 %v1955, 0.0
    %v1972 = vmax.f32 %v1956, 0.0
    %v1973 = vmax.f32 %v1957, 0.0
    %vm1974 = vcmp.lt.s32.totalorder %v104, 12
    %vm1975 = vcmp.lt.s32.totalorder %v678, 12
    %v1976 = vsel %vm1974, 1, 0
    %v1977 = vsel %vm1975, 1, 0
    %v1978 = vcvt.s32.f32 %v1976
    %v1979 = vcvt.s32.f32 %v1977
    %v1980 = vmul.f32 %v1958, %v1978
    %v1981 = vmul.f32 %v1959, %v1979
    %v1982 = vmul.f32 %v1960, %v1978
    %v1983 = vmul.f32 %v1961, %v1979
    %v1984 = vmul.f32 %v1962, %v1978
    %v1985 = vmul.f32 %v1963, %v1979
    %v1986 = vmul.f32 %v1964, %v1978
    %v1987 = vmul.f32 %v1965, %v1979
    %v1988 = vmul.f32 %v1966, %v1978
    %v1989 = vmul.f32 %v1967, %v1979
    %v1990 = vmul.f32 %v1968, %v1978
    %v1991 = vmul.f32 %v1969, %v1979
    %v1992 = vmul.f32 %v1970, %v1978
    %v1993 = vmul.f32 %v1971, %v1979
    %v1994 = vmul.f32 %v1972, %v1978
    %v1995 = vmul.f32 %v1973, %v1979
    %v1996 = vmax.f32 %v1980, %v1981
    %v1997 = vrot.slane %v1996, 4
    %v1998 = vmax.f32 %v1996, %v1997
    %v1999 = vrot.slane %v1998, 2
    %v2000 = vmax.f32 %v1998, %v1999
    %v2001 = vrot.slane %v2000, 1
    %v2002 = vmax.f32 %v2000, %v2001
    %v2003 = vmax.f32 %v1982, %v1983
    %v2004 = vrot.slane %v2003, 4
    %v2005 = vmax.f32 %v2003, %v2004
    %v2006 = vrot.slane %v2005, 2
    %v2007 = vmax.f32 %v2005, %v2006
    %v2008 = vrot.slane %v2007, 1
    %v2009 = vmax.f32 %v2007, %v2008
    %v2010 = vmax.f32 %v1984, %v1985
    %v2011 = vrot.slane %v2010, 4
    %v2012 = vmax.f32 %v2010, %v2011
    %v2013 = vrot.slane %v2012, 2
    %v2014 = vmax.f32 %v2012, %v2013
    %v2015 = vrot.slane %v2014, 1
    %v2016 = vmax.f32 %v2014, %v2015
    %v2017 = vmax.f32 %v1986, %v1987
    %v2018 = vrot.slane %v2017, 4
    %v2019 = vmax.f32 %v2017, %v2018
    %v2020 = vrot.slane %v2019, 2
    %v2021 = vmax.f32 %v2019, %v2020
    %v2022 = vrot.slane %v2021, 1
    %v2023 = vmax.f32 %v2021, %v2022
    %v2024 = vmax.f32 %v1988, %v1989
    %v2025 = vrot.slane %v2024, 4
    %v2026 = vmax.f32 %v2024, %v2025
    %v2027 = vrot.slane %v2026, 2
    %v2028 = vmax.f32 %v2026, %v2027
    %v2029 = vrot.slane %v2028, 1
    %v2030 = vmax.f32 %v2028, %v2029
    %v2031 = vmax.f32 %v1990, %v1991
    %v2032 = vrot.slane %v2031, 4
    %v2033 = vmax.f32 %v2031, %v2032
    %v2034 = vrot.slane %v2033, 2
    %v2035 = vmax.f32 %v2033, %v2034
    %v2036 = vrot.slane %v2035, 1
    %v2037 = vmax.f32 %v2035, %v2036
    %v2038 = vmax.f32 %v1992, %v1993
    %v2039 = vrot.slane %v2038, 4
    %v2040 = vmax.f32 %v2038, %v2039
    %v2041 = vrot.slane %v2040, 2
    %v2042 = vmax.f32 %v2040, %v2041
    %v2043 = vrot.slane %v2042, 1
    %v2044 = vmax.f32 %v2042, %v2043
    %v2045 = vmax.f32 %v1994, %v1995
    %v2046 = vrot.slane %v2045, 4
    %v2047 = vmax.f32 %v2045, %v2046
    %v2048 = vrot.slane %v2047, 2
    %v2049 = vmax.f32 %v2047, %v2048
    %v2050 = vrot.slane %v2049, 1
    %v2051 = vmax.f32 %v2049, %v2050
    %vm2060 = vcmask 1041409
    %v2061 = vsel %vm2060, %v714, %v707
    %vm2062 = vcmask 1042434
    %v2063 = vsel %vm2062, %v721, %v2061
    %vm2064 = vcmask 1043459
    %v2065 = vsel %vm2064, %v728, %v2063
    %vm2066 = vcmask 1044484
    %v2067 = vsel %vm2066, %v735, %v2065
    %vm2068 = vcmask 1045509
    %v2069 = vsel %vm2068, %v742, %v2067
    %vm2070 = vcmask 1046534
    %v2071 = vsel %vm2070, %v749, %v2069
    %vm2072 = vcmask 1047559
    %v2073 = vsel %vm2072, %v756, %v2071
    %v2083 = vsel %vm2060, %v1281, %v1274
    %v2084 = vsel %vm2062, %v1288, %v2083
    %v2085 = vsel %vm2064, %v1295, %v2084
    %v2086 = vsel %vm2066, %v1302, %v2085
    %v2087 = vsel %vm2068, %v1309, %v2086
    %v2088 = vsel %vm2070, %v1316, %v2087
    %v2089 = vsel %vm2072, %v1323, %v2088
    %v2099 = vsel %vm2060, %v2009, %v2002
    %v2100 = vsel %vm2062, %v2016, %v2099
    %v2101 = vsel %vm2064, %v2023, %v2100
    %v2102 = vsel %vm2066, %v2030, %v2101
    %v2103 = vsel %vm2068, %v2037, %v2102
    %v2104 = vsel %vm2070, %v2044, %v2103
    %v2105 = vsel %vm2072, %v2051, %v2104
    %v2107 = vpack.c.bf16 %v2073, %v2073
    %v2108 = vpack.c.bf16 %v2089, %v2089
    %v2109 = vpack.c.bf16 %v2105, %v2105
    %v2110 = vld [vmem:[%s7] sm:$0xf]
    %v2111 = vld [vmem:[%s7 + $0x4] sm:$0xf]
    %v2112 = vld [vmem:[%s7 + $0x8] sm:$0xf]
    %v2113 = vld [vmem:[%s7 + $0xc] sm:$0xf]
    %v2114 = vld [vmem:[%s7 + $0x10] sm:$0xf]
    %v2115 = vld [vmem:[%s7 + $0x14] sm:$0xf]
    %v2116 = vld [vmem:[%s7 + $0x18] sm:$0xf]
    %v2117 = vld [vmem:[%s7 + $0x1c] sm:$0xf]
    %v2118 = vld [vmem:[%s7 + $0x20] sm:$0xf]
    %v2119 = vld [vmem:[%s7 + $0x24] sm:$0xf]
    %v2120 = vld [vmem:[%s7 + $0x28] sm:$0xf]
    %v2121 = vld [vmem:[%s7 + $0x2c] sm:$0xf]
    %v2122 = vld [vmem:[%s7 + $0x30] sm:$0xf]
    %v2123 = vld [vmem:[%s7 + $0x34] sm:$0xf]
    %v2124 = vld [vmem:[%s7 + $0x38] sm:$0xf]
    %v2125 = vld [vmem:[%s7 + $0x3c] sm:$0xf]
    %v2126 = vld [vmem:[%s7 + $0x40] sm:$0xf]
    %v2127 = vld [vmem:[%s7 + $0x44] sm:$0xf]
    %v2128 = vld [vmem:[%s7 + $0x48] sm:$0xf]
    %v2129 = vld [vmem:[%s7 + $0x4c] sm:$0xf]
    %v2130 = vld [vmem:[%s7 + $0x50] sm:$0xf]
    %v2131 = vld [vmem:[%s7 + $0x54] sm:$0xf]
    %v2132 = vld [vmem:[%s7 + $0x58] sm:$0xf]
    %v2133 = vld [vmem:[%s7 + $0x5c] sm:$0xf]
    %v2134 = vld [vmem:[%s7 + $0x60] sm:$0xf]
    %v2135 = vld [vmem:[%s7 + $0x64] sm:$0xf]
    %v2136 = vld [vmem:[%s7 + $0x68] sm:$0xf]
    %v2137 = vld [vmem:[%s7 + $0x6c] sm:$0xf]
    %v2138 = vld [vmem:[%s7 + $0x70] sm:$0xf]
    %v2139 = vld [vmem:[%s7 + $0x74] sm:$0xf]
    %v2140 = vld [vmem:[%s7 + $0x78] sm:$0xf]
    %v2141 = vld [vmem:[%s7 + $0x7c] sm:$0xf]
    %v2142 = vld [vmem:[%s7 + $0x80] sm:$0xf]
    %v2143 = vld [vmem:[%s7 + $0x84] sm:$0xf]
    %v2144 = vld [vmem:[%s7 + $0x88] sm:$0xf]
    %v2145 = vld [vmem:[%s7 + $0x8c] sm:$0xf]
    %v2146 = vld [vmem:[%s7 + $0x90] sm:$0xf]
    %v2147 = vld [vmem:[%s7 + $0x94] sm:$0xf]
    %v2148 = vld [vmem:[%s7 + $0x98] sm:$0xf]
    %v2149 = vld [vmem:[%s7 + $0x9c] sm:$0xf]
    %v2150 = vld [vmem:[%s7 + $0xa0] sm:$0xf]
    %v2151 = vld [vmem:[%s7 + $0xa4] sm:$0xf]
    %v2152 = vld [vmem:[%s7 + $0xa8] sm:$0xf]
    %v2153 = vld [vmem:[%s7 + $0xac] sm:$0xf]
    %v2154 = vld [vmem:[%s7 + $0xb0] sm:$0xf]
    %v2155 = vld [vmem:[%s7 + $0xb4] sm:$0xf]
    %v2156 = vld [vmem:[%s7 + $0xb8] sm:$0xf]
    %v2157 = vld [vmem:[%s7 + $0xbc] sm:$0xf]
    %v2158 = vld [vmem:[%s8] sm:$0x1]
    %v2160 = vlaneseq
    %v2161 = vshrl.u32 %v2160, 7
    %v2162 = vsub.s32 0, %v2161
    %v2163 = vrot.slane %v2158, %v2162
    %v2213 = vunpack.c.l.b16 %v2110
    %v2214 = vunpack.c.l.b16 %v2111
    %v2215 = vunpack.c.l.b16 %v2112
    %v2216 = vunpack.c.l.b16 %v2113
    %v2217 = vunpack.c.l.b16 %v2114
    %v2218 = vunpack.c.l.b16 %v2115
    %v2219 = vunpack.c.l.b16 %v2116
    %v2220 = vunpack.c.l.b16 %v2117
    %v2221 = vunpack.c.l.b16 %v2118
    %v2222 = vunpack.c.l.b16 %v2119
    %v2223 = vunpack.c.l.b16 %v2120
    %v2224 = vunpack.c.l.b16 %v2121
    %v2225 = vunpack.c.l.b16 %v2122
    %v2226 = vunpack.c.l.b16 %v2123
    %v2227 = vunpack.c.l.b16 %v2124
    %v2228 = vunpack.c.l.b16 %v2125
    %v2229 = vunpack.c.l.b16 %v2126
    %v2230 = vunpack.c.l.b16 %v2127
    %v2231 = vunpack.c.l.b16 %v2128
    %v2232 = vunpack.c.l.b16 %v2129
    %v2233 = vunpack.c.l.b16 %v2130
    %v2234 = vunpack.c.l.b16 %v2131
    %v2235 = vunpack.c.l.b16 %v2132
    %v2236 = vunpack.c.l.b16 %v2133
    %v2237 = vunpack.c.l.b16 %v2134
    %v2238 = vunpack.c.l.b16 %v2135
    %v2239 = vunpack.c.l.b16 %v2136
    %v2240 = vunpack.c.l.b16 %v2137
    %v2241 = vunpack.c.l.b16 %v2138
    %v2242 = vunpack.c.l.b16 %v2139
    %v2243 = vunpack.c.l.b16 %v2140
    %v2244 = vunpack.c.l.b16 %v2141
    %v2245 = vunpack.c.l.b16 %v2142
    %v2246 = vunpack.c.l.b16 %v2143
    %v2247 = vunpack.c.l.b16 %v2144
    %v2248 = vunpack.c.l.b16 %v2145
    %v2249 = vunpack.c.l.b16 %v2146
    %v2250 = vunpack.c.l.b16 %v2147
    %v2251 = vunpack.c.l.b16 %v2148
    %v2252 = vunpack.c.l.b16 %v2149
    %v2253 = vunpack.c.l.b16 %v2150
    %v2254 = vunpack.c.l.b16 %v2151
    %v2255 = vunpack.c.l.b16 %v2152
    %v2256 = vunpack.c.l.b16 %v2153
    %v2257 = vunpack.c.l.b16 %v2154
    %v2258 = vunpack.c.l.b16 %v2155
    %v2259 = vunpack.c.l.b16 %v2156
    %v2260 = vunpack.c.l.b16 %v2157
    %v2261 = vpack.c.b16 %v2214, %v2213
    %v2262 = vpack.c.b16 %v2216, %v2215
    %v2263 = vpack.c.b16 %v2218, %v2217
    %v2264 = vpack.c.b16 %v2220, %v2219
    %v2265 = vpack.c.b16 %v2222, %v2221
    %v2266 = vpack.c.b16 %v2224, %v2223
    %v2267 = vpack.c.b16 %v2226, %v2225
    %v2268 = vpack.c.b16 %v2228, %v2227
    %v2269 = vpack.c.b16 %v2230, %v2229
    %v2270 = vpack.c.b16 %v2232, %v2231
    %v2271 = vpack.c.b16 %v2234, %v2233
    %v2272 = vpack.c.b16 %v2236, %v2235
    %v2273 = vpack.c.b16 %v2238, %v2237
    %v2274 = vpack.c.b16 %v2240, %v2239
    %v2275 = vpack.c.b16 %v2242, %v2241
    %v2276 = vpack.c.b16 %v2244, %v2243
    %v2277 = vpack.c.b16 %v2246, %v2245
    %v2278 = vpack.c.b16 %v2248, %v2247
    %v2279 = vpack.c.b16 %v2250, %v2249
    %v2280 = vpack.c.b16 %v2252, %v2251
    %v2281 = vpack.c.b16 %v2254, %v2253
    %v2282 = vpack.c.b16 %v2256, %v2255
    %v2283 = vpack.c.b16 %v2258, %v2257
    %v2284 = vpack.c.b16 %v2260, %v2259
    %2309 = vmatprep.subr.bf16.mxu0 0
    %2310 = vmatpush1.bf16.msra.mxu0 %v2261
    %2311 = vmatprep.subr.bf16.mxu0 0
    %2312 = vmatpush1.bf16.msra.mxu0 %v2262
    %2313 = vmatprep.subr.bf16.mxu0 0
    %2314 = vmatpush1.bf16.msra.mxu0 %v2263
    %2315 = vmatprep.subr.bf16.mxu0 0
    %2316 = vmatpush1.bf16.msra.mxu0 %v2264
    %2317 = vmatprep.subr.bf16.mxu0 0
    %2318 = vmatpush1.bf16.msra.mxu0 %v2265
    %2319 = vmatprep.subr.bf16.mxu0 0
    %2320 = vmatpush1.bf16.msra.mxu0 %v2266
    %2321 = vmatprep.subr.bf16.mxu0 0
    %2322 = vmatpush1.bf16.msra.mxu0 %v2267
    %2323 = vmatprep.subr.bf16.mxu0 0
    %2324 = vmatpush1.bf16.msra.mxu0 %v2268
    %2325 = vmatprep.subr.bf16.mxu0 0
    %2326 = vmatpush1.bf16.msra.mxu0 %v2269
    %2327 = vmatprep.subr.bf16.mxu0 0
    %2328 = vmatpush1.bf16.msra.mxu0 %v2270
    %2329 = vmatprep.subr.bf16.mxu0 0
    %2330 = vmatpush1.bf16.msra.mxu0 %v2271
    %2331 = vmatprep.subr.bf16.mxu0 0
    %2332 = vmatpush1.bf16.msra.mxu0 %v2272
    %2333 = vmatprep.subr.bf16.mxu0 0
    %2334 = vmatpush1.bf16.msra.mxu0 %v2273
    %2335 = vmatprep.subr.bf16.mxu0 0
    %2336 = vmatpush1.bf16.msra.mxu0 %v2274
    %2337 = vmatprep.subr.bf16.mxu0 0
    %2338 = vmatpush1.bf16.msra.mxu0 %v2275
    %2339 = vmatprep.subr.bf16.mxu0 0
    %2340 = vmatpush1.bf16.msra.mxu0 %v2276
    %2341 = vmatprep.mubr.bf16.mxu0 %v2108
    %2342 = vmatmul.mubr.bf16.gmra.mrb[0].mxu0 %v2107
    %v2343 = vpop.f32.mrb[0].mxu0
    %v2344 = vadd.f32 %v2163, %v2343
    %v2345 = vpop.f32.mrb[0].mxu0
    %v2346 = vpop.f32.mrb[0].mxu0
    %v2347 = vpop.f32.mrb[0].mxu0
    %2348 = vdwg.mxu0
    %2349 = vmatprep.subr.bf16.mxu0 0
    %2350 = vmatpush1.bf16.msra.mxu0 %v2277
    %2351 = vmatprep.subr.bf16.mxu0 0
    %2352 = vmatpush1.bf16.msra.mxu0 %v2278
    %2353 = vmatprep.subr.bf16.mxu0 0
    %2354 = vmatpush1.bf16.msra.mxu0 %v2279
    %2355 = vmatprep.subr.bf16.mxu0 0
    %2356 = vmatpush1.bf16.msra.mxu0 %v2280
    %2357 = vmatprep.subr.bf16.mxu0 0
    %2358 = vmatpush1.bf16.msra.mxu0 %v2281
    %2359 = vmatprep.subr.bf16.mxu0 0
    %2360 = vmatpush1.bf16.msra.mxu0 %v2282
    %2361 = vmatprep.subr.bf16.mxu0 0
    %2362 = vmatpush1.bf16.msra.mxu0 %v2283
    %2363 = vmatprep.subr.bf16.mxu0 0
    %2364 = vmatpush1.bf16.msra.mxu0 %v2284
    %2365 = vmatprep.subr.bf16.mxu0 0
    %2366 = vmatpush1.bf16.msra.mxu0 0
    %2367 = vmatprep.subr.bf16.mxu0 0
    %2368 = vmatpush1.bf16.msra.mxu0 0
    %2369 = vmatprep.subr.bf16.mxu0 0
    %2370 = vmatpush1.bf16.msra.mxu0 0
    %2371 = vmatprep.subr.bf16.mxu0 0
    %2372 = vmatpush1.bf16.msra.mxu0 0
    %2373 = vmatprep.subr.bf16.mxu0 0
    %2374 = vmatpush1.bf16.msra.mxu0 0
    %2375 = vmatprep.subr.bf16.mxu0 0
    %2376 = vmatpush1.bf16.msra.mxu0 0
    %2377 = vmatprep.subr.bf16.mxu0 0
    %2378 = vmatpush1.bf16.msra.mxu0 0
    %2379 = vmatprep.subr.bf16.mxu0 0
    %2380 = vmatpush1.bf16.msra.mxu0 0
    %2381 = vmatprep.mubr.bf16.mxu0 0
    %2382 = vmatmul.mubr.bf16.gmra.mrb[0].mxu0 %v2109
    %v2383 = vpop.f32.mrb[0].mxu0
    %v2384 = vadd.f32 %v2344, %v2383
    %v2385 = vpop.f32.mrb[0].mxu0
    %v2386 = vpop.f32.mrb[0].mxu0
    %v2387 = vpop.f32.mrb[0].mxu0
    %2388 = vdwg.mxu0
    %v2389 = vmax.f32 %v2384, 0.0
    %v2390 = vpack.c.bf16 %v2389, %v2389
    %v2391 = vld [vmem:[%s9] sm:$0xf]
    %v2392 = vld [vmem:[%s9 + $0x4] sm:$0xf]
    %v2393 = vld [vmem:[%s9 + $0x8] sm:$0xf]
    %v2394 = vld [vmem:[%s9 + $0xc] sm:$0xf]
    %v2395 = vld [vmem:[%s9 + $0x10] sm:$0xf]
    %v2396 = vld [vmem:[%s9 + $0x14] sm:$0xf]
    %v2397 = vld [vmem:[%s9 + $0x18] sm:$0xf]
    %v2398 = vld [vmem:[%s9 + $0x1c] sm:$0xf]
    %v2399 = vld [vmem:[%s9 + $0x20] sm:$0xf]
    %v2400 = vld [vmem:[%s9 + $0x24] sm:$0xf]
    %v2401 = vld [vmem:[%s9 + $0x28] sm:$0xf]
    %v2402 = vld [vmem:[%s9 + $0x2c] sm:$0xf]
    %v2403 = vld [vmem:[%s9 + $0x30] sm:$0xf]
    %v2404 = vld [vmem:[%s9 + $0x34] sm:$0xf]
    %v2405 = vld [vmem:[%s9 + $0x38] sm:$0xf]
    %v2406 = vld [vmem:[%s9 + $0x3c] sm:$0xf]
    %v2407 = vld [vmem:[%s10] sm:$0x1]
    %v2409 = vlaneseq
    %v2410 = vshrl.u32 %v2409, 7
    %v2411 = vsub.s32 0, %v2410
    %v2412 = vrot.slane %v2407, %v2411
    %v2430 = vunpack.c.l.b16 %v2391
    %v2431 = vunpack.c.l.b16 %v2392
    %v2432 = vunpack.c.l.b16 %v2393
    %v2433 = vunpack.c.l.b16 %v2394
    %v2434 = vunpack.c.l.b16 %v2395
    %v2435 = vunpack.c.l.b16 %v2396
    %v2436 = vunpack.c.l.b16 %v2397
    %v2437 = vunpack.c.l.b16 %v2398
    %v2438 = vunpack.c.l.b16 %v2399
    %v2439 = vunpack.c.l.b16 %v2400
    %v2440 = vunpack.c.l.b16 %v2401
    %v2441 = vunpack.c.l.b16 %v2402
    %v2442 = vunpack.c.l.b16 %v2403
    %v2443 = vunpack.c.l.b16 %v2404
    %v2444 = vunpack.c.l.b16 %v2405
    %v2445 = vunpack.c.l.b16 %v2406
    %v2446 = vpack.c.b16 %v2431, %v2430
    %v2447 = vpack.c.b16 %v2433, %v2432
    %v2448 = vpack.c.b16 %v2435, %v2434
    %v2449 = vpack.c.b16 %v2437, %v2436
    %v2450 = vpack.c.b16 %v2439, %v2438
    %v2451 = vpack.c.b16 %v2441, %v2440
    %v2452 = vpack.c.b16 %v2443, %v2442
    %v2453 = vpack.c.b16 %v2445, %v2444
    %2462 = vmatprep.subr.bf16.mxu0 0
    %2463 = vmatpush1.bf16.msra.mxu0 %v2446
    %2464 = vmatprep.subr.bf16.mxu0 0
    %2465 = vmatpush1.bf16.msra.mxu0 %v2447
    %2466 = vmatprep.subr.bf16.mxu0 0
    %2467 = vmatpush1.bf16.msra.mxu0 %v2448
    %2468 = vmatprep.subr.bf16.mxu0 0
    %2469 = vmatpush1.bf16.msra.mxu0 %v2449
    %2470 = vmatprep.subr.bf16.mxu0 0
    %2471 = vmatpush1.bf16.msra.mxu0 %v2450
    %2472 = vmatprep.subr.bf16.mxu0 0
    %2473 = vmatpush1.bf16.msra.mxu0 %v2451
    %2474 = vmatprep.subr.bf16.mxu0 0
    %2475 = vmatpush1.bf16.msra.mxu0 %v2452
    %2476 = vmatprep.subr.bf16.mxu0 0
    %2477 = vmatpush1.bf16.msra.mxu0 %v2453
    %2478 = vmatprep.subr.bf16.mxu0 0
    %2479 = vmatpush1.bf16.msra.mxu0 0
    %2480 = vmatprep.subr.bf16.mxu0 0
    %2481 = vmatpush1.bf16.msra.mxu0 0
    %2482 = vmatprep.subr.bf16.mxu0 0
    %2483 = vmatpush1.bf16.msra.mxu0 0
    %2484 = vmatprep.subr.bf16.mxu0 0
    %2485 = vmatpush1.bf16.msra.mxu0 0
    %2486 = vmatprep.subr.bf16.mxu0 0
    %2487 = vmatpush1.bf16.msra.mxu0 0
    %2488 = vmatprep.subr.bf16.mxu0 0
    %2489 = vmatpush1.bf16.msra.mxu0 0
    %2490 = vmatprep.subr.bf16.mxu0 0
    %2491 = vmatpush1.bf16.msra.mxu0 0
    %2492 = vmatprep.subr.bf16.mxu0 0
    %2493 = vmatpush1.bf16.msra.mxu0 0
    %2494 = vmatprep.mubr.bf16.mxu0 0
    %2495 = vmatmul.mubr.bf16.gmra.mrb[0].mxu0 %v2390
    %v2496 = vpop.f32.mrb[0].mxu0
    %v2497 = vadd.f32 %v2412, %v2496
    %v2498 = vpop.f32.mrb[0].mxu0
    %v2499 = vpop.f32.mrb[0].mxu0
    %v2500 = vpop.f32.mrb[0].mxu0
    %2501 = vdwg.mxu0
    %2502 = vst [vmem:[%s11] sm:$0xff] %v2497
    // Predicated region
    $region54: #{topic_cnn_forward.1} parent=1 // pred_check
      _
    $region55: #{topic_cnn_forward.1} parent=1 // pred_check_branch
      %2504 = sbr.rel (0) target = $region57
    $region56: #{topic_cnn_forward.1} parent=1 // pred_region
      _
    $region57: #{topic_cnn_forward.1} parent=1 // pred_fallthru
      _
    // Predicated region
    $region58: #{topic_cnn_forward.1} parent=1 // pred_check
      _
    $region59: #{topic_cnn_forward.1} parent=1 // pred_check_branch
      %2506 = sbr.rel (0) target = $region61
    $region60: #{topic_cnn_forward.1} parent=1 // pred_region
      _
    $region61: #{topic_cnn_forward.1} parent=1 // pred_fallthru
      _
    %2507 = vsyncpa [#allocation3], 1
    %2508 = vsyncpa [#allocation5], 1

</llo_original>
